<compile_context>
chip_gen: v7x
topology: tpu7x:2x2x1
jax: 0.10.0
libtpu: 0.0.40
codegen_flags: <defaults>
</compile_context>

<pallas_src>
import functools

import jax
import jax.numpy as jnp
from jax.experimental import pallas as pl
from jax.experimental.pallas import tpu as pltpu


def _block_kernel(x_ref, wtop_ref, wbot_ref, b_ref, gamma_ref, beta_ref,
                  fold_ref, bcast_ref, peven_ref, podd_ref,
                  o_ref, y_scr,
                  *, NB, H, W, Cout, n_total, eps):
    """Fused conv3x3 + bias + ReLU + train-mode BatchNorm + 2x2 max-pool."""
    Ho = H // 2
    WC = W * Cout
    i = pl.program_id(0)

    # ---- phase 1: conv + bias + ReLU for this step's NB samples --------------------
    # Input rows are h-pair folded: row r = [xpad(2r) | xpad(2r+1)] over (W+2)*Cin
    # lanes.  Output row r = [conv row 2r | conv row 2r+1] over 2*W*Cout lanes, so the
    # conv is two banded matmuls (folded input rows r and r+1) per sample.
    wtop = wtop_ref[...]                                  # (2*(W+2)*Cin, 2*W*Cout) bf16
    wbot = wbot_ref[...]
    bias = b_ref[...]                                     # (1, 2*W*Cout) f32
    for n in range(NB):                                   # NB is small & static
        xs = x_ref[n]                                     # ((H+2)//2, 2*(W+2)*Cin) bf16
        y_n = (jnp.dot(xs[0:Ho, :], wtop, preferred_element_type=jnp.float32) +
               jnp.dot(xs[1:Ho + 1, :], wbot, preferred_element_type=jnp.float32))
        y_n = jnp.maximum(y_n + bias, 0.0)                # bias + ReLU (Dropout p=0 = id)
        row0 = pl.multiple_of((i * NB + n) * Ho, Ho)
        y_scr[pl.ds(row0, Ho), :] = y_n                   # f32, stays resident in VMEM

    # ---- phase 2 (last step only): BN batch stats + affine + 2x2 max-pool ----------
    @pl.when(i == pl.num_programs(0) - 1)
    def _():
        ys = y_scr[...]                                   # (N*Ho, 2*W*Cout) f32
        inv_cnt = 1.0 / float(n_total * H * W)
        fold = fold_ref[...]                              # (2*W*Cout, Cout) 0/1 fold
        bcast = bcast_ref[...]                            # (Cout, 2*W*Cout) 0/1 broadcast
        s_lane = jnp.sum(ys, axis=0, keepdims=True)       # (1, 2*W*Cout)
        mean = jnp.dot(s_lane, fold, preferred_element_type=jnp.float32) * inv_cnt
        mean_t = jnp.dot(mean, bcast, preferred_element_type=jnp.float32)
        d = ys - mean_t                                    # two-pass variance (no E[x^2]-E[x]^2)
        var = jnp.dot(jnp.sum(d * d, axis=0, keepdims=True), fold,
                      preferred_element_type=jnp.float32) * inv_cnt
        scale = gamma_ref[...] * jax.lax.rsqrt(var + eps)  # (1, Cout)
        shift = beta_ref[...] - mean * scale
        t = (ys * jnp.dot(scale, bcast, preferred_element_type=jnp.float32)
             + jnp.dot(shift, bcast, preferred_element_type=jnp.float32))
        hm = jnp.maximum(t[:, :WC], t[:, WC:])            # max over the h-pair
        pooled = jnp.maximum(                             # max over the w-pair
            jnp.dot(hm, peven_ref[...], preferred_element_type=jnp.float32),
            jnp.dot(hm, podd_ref[...], preferred_element_type=jnp.float32))
        o_ref[...] = pooled.astype(o_ref.dtype)           # one (N*Ho, Wo*Cout) store


def block_forward(x, w, b, gamma, beta, *, eps=1e-5, max_samples_per_step=8):
    """x: (N, Cin, H, W) f32, w: (Cout, Cin, 3, 3), b/gamma/beta: (Cout,)."""
    N, Cin, H, W = x.shape
    Cout, Cin2, KH, KW = w.shape
    assert Cin2 == Cin and KH == 3 and KW == 3
    assert H % 2 == 0 and W % 2 == 0, "MaxPool2d(2,2) needs even H and W"
    Ho, Wo = H // 2, W // 2
    HF, Wp = (H + 2) // 2, W + 2
    WC = W * Cout
    K2 = 2 * Wp * Cin                     # contraction width of each conv dot
    f32 = jnp.float32

    # fused single-call path keeps the whole batch's activations in VMEM
    assert N * Ho * 2 * WC * 4 <= 4 * 1024 * 1024, "batch activations must fit in VMEM"

    # samples per grid step (largest divisor of N that is <= max_samples_per_step)
    NB = 1
    for cand in range(min(N, max_samples_per_step), 0, -1):
        if N % cand == 0:
            NB = cand
            break
    num_steps = N // NB

    # ---- input: NCHW -> NHWC, zero-pad H and W by 1, fold h-pairs onto the lanes ----
    x_nhwc = jnp.transpose(x, (0, 2, 3, 1))                      # (N, H, W, Cin)
    x_pad = jnp.pad(x_nhwc, ((0, 0), (1, 1), (1, 1), (0, 0)))    # (N, H+2, W+2, Cin)
    x_fold = x_pad.reshape(N, HF, K2).astype(jnp.bfloat16)       # (N, (H+2)/2, 2*(W+2)*Cin)

    # ---- conv weights as two banded matrices (taps + W folded into K / Nout) --------
    # wbig[g*(Wp*Cin)+p*Cin+ci, q*W*Cout+w*Cout+co] = k[dy,dx,ci,co]
    #   with g = dy + q (q = output-row parity) and p = w + dx (zero-padded column).
    kern = jnp.transpose(w, (2, 3, 1, 0)).astype(f32)            # (3, 3, Cin, Cout)
    sel_g = (jnp.arange(4)[None, None, :] ==
             jnp.arange(3)[:, None, None] + jnp.arange(2)[None, :, None]).astype(f32)
    sel_p = (jnp.arange(Wp)[None, None, :] ==
             jnp.arange(3)[:, None, None] + jnp.arange(W)[None, :, None]).astype(f32)
    wbig = jnp.einsum('yxio,yqg,xwp->gpiqwo', kern, sel_g, sel_p)
    wbig = wbig.reshape(2 * K2, 2 * WC).astype(jnp.bfloat16)
    w_top, w_bot = wbig[:K2], wbig[K2:]

    bias2 = jnp.tile(b.astype(f32), 2 * W).reshape(1, 2 * WC)
    gamma2 = gamma.reshape(1, Cout).astype(f32)
    beta2 = beta.reshape(1, Cout).astype(f32)

    # per-channel fold / broadcast matrices (avoid in-kernel lane<->sublane reshapes)
    fold = jnp.tile(jnp.eye(Cout, dtype=f32), (2 * W, 1))        # (2*W*Cout, Cout)
    bcast = fold.T                                               # (Cout, 2*W*Cout)

    # 0/1 lane-selection matrices for the w-pair max of the 2x2 pool
    rw, rc = jnp.arange(WC) // Cout, jnp.arange(WC) % Cout
    cw, cc = jnp.arange(Wo * Cout) // Cout, jnp.arange(Wo * Cout) % Cout
    same_c = rc[:, None] == cc[None, :]
    p_even = ((rw[:, None] == 2 * cw[None, :]) & same_c).astype(f32)
    p_odd = ((rw[:, None] == 2 * cw[None, :] + 1) & same_c).astype(f32)

    kernel = functools.partial(_block_kernel, NB=NB, H=H, W=W, Cout=Cout,
                               n_total=N, eps=eps)

    conv_flops = 2 * 2 * N * Ho * K2 * (2 * WC)
    bytes_accessed = int(x_fold.size * 2 + wbig.size * 2 + bias2.size * 4
                         + (fold.size + bcast.size + p_even.size + p_odd.size
                            + gamma2.size + beta2.size) * 4
                         + N * Ho * Wo * Cout * 4)

    out_fold = pl.pallas_call(
        kernel,
        grid=(num_steps,),
        in_specs=[
            pl.BlockSpec((NB, HF, K2), lambda i: (i, 0, 0)),
            pl.BlockSpec((K2, 2 * WC), lambda i: (0, 0)),
            pl.BlockSpec((K2, 2 * WC), lambda i: (0, 0)),
            pl.BlockSpec((1, 2 * WC), lambda i: (0, 0)),
            pl.BlockSpec((1, Cout), lambda i: (0, 0)),
            pl.BlockSpec((1, Cout), lambda i: (0, 0)),
            pl.BlockSpec((2 * WC, Cout), lambda i: (0, 0)),
            pl.BlockSpec((Cout, 2 * WC), lambda i: (0, 0)),
            pl.BlockSpec((WC, Wo * Cout), lambda i: (0, 0)),
            pl.BlockSpec((WC, Wo * Cout), lambda i: (0, 0)),
        ],
        out_specs=pl.BlockSpec((N * Ho, Wo * Cout), lambda i: (0, 0)),
        out_shape=jax.ShapeDtypeStruct((N * Ho, Wo * Cout), jnp.float32),
        scratch_shapes=[pltpu.VMEM((N * Ho, 2 * WC), jnp.float32)],
        compiler_params=pltpu.CompilerParams(
            dimension_semantics=("arbitrary",)),
        cost_estimate=pl.CostEstimate(
            flops=conv_flops, transcendentals=Cout, bytes_accessed=bytes_accessed),
    )(x_fold, w_top, w_bot, bias2, gamma2, beta2, fold, bcast, p_even, p_odd)

    # (N*Ho, Wo*Cout) -> (N, Cout, Ho, Wo)
    return jnp.transpose(out_fold.reshape(N, Ho, Wo, Cout), (0, 3, 1, 2))


def block_reference(x, w, b, gamma, beta, *, eps=1e-5):
    """Pure-JAX f32 reference (NCHW), train-mode BN with batch statistics."""
    y = jax.lax.conv_general_dilated(
        x, w, window_strides=(1, 1), padding=((1, 1), (1, 1)),
        dimension_numbers=("NCHW", "OIHW", "NCHW"))
    y = y + b.reshape(1, -1, 1, 1)
    y = jnp.maximum(y, 0.0)                     # ReLU; Dropout(p=0) is identity
    mean = jnp.mean(y, axis=(0, 2, 3), keepdims=True)
    var = jnp.mean((y - mean) ** 2, axis=(0, 2, 3), keepdims=True)
    y = (y - mean) * jax.lax.rsqrt(var + eps) * gamma.reshape(1, -1, 1, 1) \
        + beta.reshape(1, -1, 1, 1)
    N, C, H, W = y.shape
    return y.reshape(N, C, H // 2, 2, W // 2, 2).max(axis=(3, 5))


if __name__ == "__main__":
    N, Cin, Cout, H, W = 2, 4, 8, 16, 16

    key = jax.random.PRNGKey(0)
    k1, k2, k3, k4, k5 = jax.random.split(key, 5)
    x = jax.random.normal(k1, (N, Cin, H, W), jnp.float32)
    w = 0.1 * jax.random.normal(k2, (Cout, Cin, 3, 3), jnp.float32)
    b = 0.1 * jax.random.normal(k3, (Cout,), jnp.float32)
    gamma = 1.0 + 0.1 * jax.random.normal(k4, (Cout,), jnp.float32)
    beta = 0.1 * jax.random.normal(k5, (Cout,), jnp.float32)

    out = jax.block_until_ready(block_forward(x, w, b, gamma, beta))
    ref = block_reference(x, w, b, gamma, beta)

    assert out.shape == (N, Cout, H // 2, W // 2), out.shape
    max_err = float(jnp.max(jnp.abs(out - ref)))
    # bf16 conv operands vs. the f32 reference -> ~1e-2 level error
    assert jnp.allclose(out, ref, atol=3e-2, rtol=3e-2), max_err

    print("KERNEL_OK")
</pallas_src>

<mosaic_0001>
module attributes {stable_mosaic.version = 11 : i64} {
  func.func @_block_kernel(%arg0: i32, %arg1: memref<2x9x144xbf16, #tpu.memory_space<vmem>>, %arg2: memref<144x256xbf16, #tpu.memory_space<vmem>>, %arg3: memref<144x256xbf16, #tpu.memory_space<vmem>>, %arg4: memref<1x256xf32, #tpu.memory_space<vmem>>, %arg5: memref<1x8xf32, #tpu.memory_space<vmem>>, %arg6: memref<1x8xf32, #tpu.memory_space<vmem>>, %arg7: memref<256x8xf32, #tpu.memory_space<vmem>>, %arg8: memref<8x256xf32, #tpu.memory_space<vmem>>, %arg9: memref<128x64xf32, #tpu.memory_space<vmem>>, %arg10: memref<128x64xf32, #tpu.memory_space<vmem>>, %arg11: memref<16x64xf32, #tpu.memory_space<vmem>>, %arg12: memref<16x256xf32, #tpu.memory_space<vmem>>) attributes {dimension_semantics = [#tpu.dimension_semantics<arbitrary>], iteration_bounds = array<i64: 1>, scalar_prefetch = 0 : i64, scratch_operands = 1 : i64, tpu.core_type = #tpu.core_type<tc>, window_params = [{transform_indices = @transform_0, window_bounds = array<i64: 2, 9, 144>}, {pipeline_mode = #tpu.pipeline_mode<synchronous>, transform_indices = @transform_1, window_bounds = array<i64: 144, 256>}, {pipeline_mode = #tpu.pipeline_mode<synchronous>, transform_indices = @transform_2, window_bounds = array<i64: 144, 256>}, {pipeline_mode = #tpu.pipeline_mode<synchronous>, transform_indices = @transform_3, window_bounds = array<i64: 1, 256>}, {pipeline_mode = #tpu.pipeline_mode<synchronous>, transform_indices = @transform_4, window_bounds = array<i64: 1, 8>}, {pipeline_mode = #tpu.pipeline_mode<synchronous>, transform_indices = @transform_5, window_bounds = array<i64: 1, 8>}, {pipeline_mode = #tpu.pipeline_mode<synchronous>, transform_indices = @transform_6, window_bounds = array<i64: 256, 8>}, {pipeline_mode = #tpu.pipeline_mode<synchronous>, transform_indices = @transform_7, window_bounds = array<i64: 8, 256>}, {pipeline_mode = #tpu.pipeline_mode<synchronous>, transform_indices = @transform_8, window_bounds = array<i64: 128, 64>}, {pipeline_mode = #tpu.pipeline_mode<synchronous>, transform_indices = @transform_9, window_bounds = array<i64: 128, 64>}, {pipeline_mode = #tpu.pipeline_mode<synchronous>, transform_indices = @transform_10, window_bounds = array<i64: 16, 64>}]} {
    %c0 = arith.constant 0 : index
    %c0_0 = arith.constant 0 : index
    %0 = vector.load %arg2[%c0, %c0_0] : memref<144x256xbf16, #tpu.memory_space<vmem>>, vector<144x256xbf16>
    %c0_1 = arith.constant 0 : index
    %c0_2 = arith.constant 0 : index
    %1 = vector.load %arg3[%c0_1, %c0_2] : memref<144x256xbf16, #tpu.memory_space<vmem>>, vector<144x256xbf16>
    %c0_3 = arith.constant 0 : index
    %c0_4 = arith.constant 0 : index
    %2 = vector.load %arg4[%c0_3, %c0_4] : memref<1x256xf32, #tpu.memory_space<vmem>>, vector<1x256xf32>
    %c0_5 = arith.constant 0 : index
    %c0_6 = arith.constant 0 : index
    %c0_7 = arith.constant 0 : index
    %3 = vector.load %arg1[%c0_5, %c0_6, %c0_7] : memref<2x9x144xbf16, #tpu.memory_space<vmem>>, vector<1x9x144xbf16>
    %4 = vector.shape_cast %3 : vector<1x9x144xbf16> to vector<9x144xbf16>
    %5 = vector.extract_strided_slice %4 {offsets = [0, 0], sizes = [8, 144], strides = [1, 1]} : vector<9x144xbf16> to vector<8x144xbf16>
    %cst = arith.constant dense<0.000000e+00> : vector<8x256xf32>
    %6 = tpu.matmul %5, %0, %cst {dimension_numbers = #tpu.dot_dimension_numbers<[1], [0], [0], [1], [0, 0, 1, 1], [], []>} : vector<8x144xbf16>, vector<144x256xbf16>, vector<8x256xf32> -> vector<8x256xf32>
    %7 = vector.extract_strided_slice %4 {offsets = [1, 0], sizes = [8, 144], strides = [1, 1]} : vector<9x144xbf16> to vector<8x144xbf16>
    %cst_8 = arith.constant dense<0.000000e+00> : vector<8x256xf32>
    %8 = tpu.matmul %7, %1, %cst_8 {dimension_numbers = #tpu.dot_dimension_numbers<[1], [0], [0], [1], [0, 0, 1, 1], [], []>} : vector<8x144xbf16>, vector<144x256xbf16>, vector<8x256xf32> -> vector<8x256xf32>
    %9 = arith.addf %6, %8 : vector<8x256xf32>
    %10 = vector.broadcast %2 : vector<1x256xf32> to vector<8x256xf32>
    %11 = arith.addf %9, %10 : vector<8x256xf32>
    %cst_9 = arith.constant 0.000000e+00 : f32
    %12 = vector.broadcast %cst_9 : f32 to vector<8x256xf32>
    %13 = arith.maximumf %11, %12 : vector<8x256xf32>
    %c2_i32 = arith.constant 2 : i32
    %14 = arith.muli %arg0, %c2_i32 : i32
    %c0_i32 = arith.constant 0 : i32
    %15 = arith.addi %14, %c0_i32 : i32
    %c8_i32 = arith.constant 8 : i32
    %16 = arith.muli %15, %c8_i32 : i32
    %17 = tpu.assume_multiple %16, 8 : i32
    %18 = arith.index_cast %17 : i32 to index
    %c0_10 = arith.constant 0 : index
    %19 = vector.load %arg12[%18, %c0_10] : memref<16x256xf32, #tpu.memory_space<vmem>>, vector<8x256xf32>
    tpu.vector_store %arg12[%18, %c0_10], %13 {strides = array<i32>} : memref<16x256xf32, #tpu.memory_space<vmem>>, vector<8x256xf32>,
    %c1 = arith.constant 1 : index
    %c0_11 = arith.constant 0 : index
    %c0_12 = arith.constant 0 : index
    %20 = vector.load %arg1[%c1, %c0_11, %c0_12] : memref<2x9x144xbf16, #tpu.memory_space<vmem>>, vector<1x9x144xbf16>
    %21 = vector.shape_cast %20 : vector<1x9x144xbf16> to vector<9x144xbf16>
    %22 = vector.extract_strided_slice %21 {offsets = [0, 0], sizes = [8, 144], strides = [1, 1]} : vector<9x144xbf16> to vector<8x144xbf16>
    %cst_13 = arith.constant dense<0.000000e+00> : vector<8x256xf32>
    %23 = tpu.matmul %22, %0, %cst_13 {dimension_numbers = #tpu.dot_dimension_numbers<[1], [0], [0], [1], [0, 0, 1, 1], [], []>} : vector<8x144xbf16>, vector<144x256xbf16>, vector<8x256xf32> -> vector<8x256xf32>
    %24 = vector.extract_strided_slice %21 {offsets = [1, 0], sizes = [8, 144], strides = [1, 1]} : vector<9x144xbf16> to vector<8x144xbf16>
    %cst_14 = arith.constant dense<0.000000e+00> : vector<8x256xf32>
    %25 = tpu.matmul %24, %1, %cst_14 {dimension_numbers = #tpu.dot_dimension_numbers<[1], [0], [0], [1], [0, 0, 1, 1], [], []>} : vector<8x144xbf16>, vector<144x256xbf16>, vector<8x256xf32> -> vector<8x256xf32>
    %26 = arith.addf %23, %25 : vector<8x256xf32>
    %27 = vector.broadcast %2 : vector<1x256xf32> to vector<8x256xf32>
    %28 = arith.addf %26, %27 : vector<8x256xf32>
    %cst_15 = arith.constant 0.000000e+00 : f32
    %29 = vector.broadcast %cst_15 : f32 to vector<8x256xf32>
    %30 = arith.maximumf %28, %29 : vector<8x256xf32>
    %c2_i32_16 = arith.constant 2 : i32
    %31 = arith.muli %arg0, %c2_i32_16 : i32
    %c1_i32 = arith.constant 1 : i32
    %32 = arith.addi %31, %c1_i32 : i32
    %c8_i32_17 = arith.constant 8 : i32
    %33 = arith.muli %32, %c8_i32_17 : i32
    %34 = tpu.assume_multiple %33, 8 : i32
    %35 = arith.index_cast %34 : i32 to index
    %c0_18 = arith.constant 0 : index
    %36 = vector.load %arg12[%35, %c0_18] : memref<16x256xf32, #tpu.memory_space<vmem>>, vector<8x256xf32>
    tpu.vector_store %arg12[%35, %c0_18], %30 {strides = array<i32>} : memref<16x256xf32, #tpu.memory_space<vmem>>, vector<8x256xf32>,
    %c0_i32_19 = arith.constant 0 : i32
    %37 = arith.cmpi eq, %arg0, %c0_i32_19 : i32
    %38 = arith.extui %37 : i1 to i32
    %c0_i32_20 = arith.constant 0 : i32
    %39 = arith.cmpi ne, %38, %c0_i32_20 : i32
    scf.if %39 {
      %c0_21 = arith.constant 0 : index
      %c0_22 = arith.constant 0 : index
      %40 = vector.load %arg12[%c0_21, %c0_22] : memref<16x256xf32, #tpu.memory_space<vmem>>, vector<16x256xf32>
      %c0_23 = arith.constant 0 : index
      %c0_24 = arith.constant 0 : index
      %41 = vector.load %arg7[%c0_23, %c0_24] : memref<256x8xf32, #tpu.memory_space<vmem>>, vector<256x8xf32>
      %c0_25 = arith.constant 0 : index
      %c0_26 = arith.constant 0 : index
      %42 = vector.load %arg8[%c0_25, %c0_26] : memref<8x256xf32, #tpu.memory_space<vmem>>, vector<8x256xf32>
      %cst_27 = arith.constant dense<0.000000e+00> : vector<256xf32>
      %43 = vector.multi_reduction <add>, %40, %cst_27 [0] : vector<16x256xf32> to vector<256xf32>
      %44 = vector.shape_cast %43 : vector<256xf32> to vector<1x256xf32>
      %cst_28 = arith.constant dense<0.000000e+00> : vector<1x8xf32>
      %45 = tpu.matmul %44, %41, %cst_28 {dimension_numbers = #tpu.dot_dimension_numbers<[1], [0], [0], [1], [0, 0, 1, 1], [], []>} : vector<1x256xf32>, vector<256x8xf32>, vector<1x8xf32> -> vector<1x8xf32>
      %cst_29 = arith.constant 0.001953125 : f32
      %46 = vector.broadcast %cst_29 : f32 to vector<1x8xf32>
      %47 = arith.mulf %45, %46 : vector<1x8xf32>
      %cst_30 = arith.constant dense<0.000000e+00> : vector<1x256xf32>
      %48 = tpu.matmul %47, %42, %cst_30 {dimension_numbers = #tpu.dot_dimension_numbers<[1], [0], [0], [1], [0, 0, 1, 1], [], []>} : vector<1x8xf32>, vector<8x256xf32>, vector<1x256xf32> -> vector<1x256xf32>
      %49 = vector.broadcast %48 : vector<1x256xf32> to vector<16x256xf32>
      %50 = arith.subf %40, %49 : vector<16x256xf32>
      %51 = arith.mulf %50, %50 : vector<16x256xf32>
      %cst_31 = arith.constant dense<0.000000e+00> : vector<256xf32>
      %52 = vector.multi_reduction <add>, %51, %cst_31 [0] : vector<16x256xf32> to vector<256xf32>
      %53 = vector.shape_cast %52 : vector<256xf32> to vector<1x256xf32>
      %cst_32 = arith.constant dense<0.000000e+00> : vector<1x8xf32>
      %54 = tpu.matmul %53, %41, %cst_32 {dimension_numbers = #tpu.dot_dimension_numbers<[1], [0], [0], [1], [0, 0, 1, 1], [], []>} : vector<1x256xf32>, vector<256x8xf32>, vector<1x8xf32> -> vector<1x8xf32>
      %cst_33 = arith.constant 0.001953125 : f32
      %55 = vector.broadcast %cst_33 : f32 to vector<1x8xf32>
      %56 = arith.mulf %54, %55 : vector<1x8xf32>
      %c0_34 = arith.constant 0 : index
      %c0_35 = arith.constant 0 : index
      %57 = vector.load %arg5[%c0_34, %c0_35] : memref<1x8xf32, #tpu.memory_space<vmem>>, vector<1x8xf32>
      %cst_36 = arith.constant 9.99999974E-6 : f32
      %58 = vector.broadcast %cst_36 : f32 to vector<1x8xf32>
      %59 = arith.addf %56, %58 : vector<1x8xf32>
      %60 = math.rsqrt %59 : vector<1x8xf32>
      %61 = arith.mulf %57, %60 : vector<1x8xf32>
      %c0_37 = arith.constant 0 : index
      %c0_38 = arith.constant 0 : index
      %62 = vector.load %arg6[%c0_37, %c0_38] : memref<1x8xf32, #tpu.memory_space<vmem>>, vector<1x8xf32>
      %63 = arith.mulf %47, %61 : vector<1x8xf32>
      %64 = arith.subf %62, %63 : vector<1x8xf32>
      %cst_39 = arith.constant dense<0.000000e+00> : vector<1x256xf32>
      %65 = tpu.matmul %61, %42, %cst_39 {dimension_numbers = #tpu.dot_dimension_numbers<[1], [0], [0], [1], [0, 0, 1, 1], [], []>} : vector<1x8xf32>, vector<8x256xf32>, vector<1x256xf32> -> vector<1x256xf32>
      %66 = vector.broadcast %65 : vector<1x256xf32> to vector<16x256xf32>
      %67 = arith.mulf %40, %66 : vector<16x256xf32>
      %cst_40 = arith.constant dense<0.000000e+00> : vector<1x256xf32>
      %68 = tpu.matmul %64, %42, %cst_40 {dimension_numbers = #tpu.dot_dimension_numbers<[1], [0], [0], [1], [0, 0, 1, 1], [], []>} : vector<1x8xf32>, vector<8x256xf32>, vector<1x256xf32> -> vector<1x256xf32>
      %69 = vector.broadcast %68 : vector<1x256xf32> to vector<16x256xf32>
      %70 = arith.addf %67, %69 : vector<16x256xf32>
      %71 = vector.extract_strided_slice %70 {offsets = [0, 0], sizes = [16, 128], strides = [1, 1]} : vector<16x256xf32> to vector<16x128xf32>
      %72 = vector.extract_strided_slice %70 {offsets = [0, 128], sizes = [16, 128], strides = [1, 1]} : vector<16x256xf32> to vector<16x128xf32>
      %73 = arith.maximumf %71, %72 : vector<16x128xf32>
      %c0_41 = arith.constant 0 : index
      %c0_42 = arith.constant 0 : index
      %74 = vector.load %arg9[%c0_41, %c0_42] : memref<128x64xf32, #tpu.memory_space<vmem>>, vector<128x64xf32>
      %cst_43 = arith.constant dense<0.000000e+00> : vector<16x64xf32>
      %75 = tpu.matmul %73, %74, %cst_43 {dimension_numbers = #tpu.dot_dimension_numbers<[1], [0], [0], [1], [0, 0, 1, 1], [], []>} : vector<16x128xf32>, vector<128x64xf32>, vector<16x64xf32> -> vector<16x64xf32>
      %c0_44 = arith.constant 0 : index
      %c0_45 = arith.constant 0 : index
      %76 = vector.load %arg10[%c0_44, %c0_45] : memref<128x64xf32, #tpu.memory_space<vmem>>, vector<128x64xf32>
      %cst_46 = arith.constant dense<0.000000e+00> : vector<16x64xf32>
      %77 = tpu.matmul %73, %76, %cst_46 {dimension_numbers = #tpu.dot_dimension_numbers<[1], [0], [0], [1], [0, 0, 1, 1], [], []>} : vector<16x128xf32>, vector<128x64xf32>, vector<16x64xf32> -> vector<16x64xf32>
      %78 = arith.maximumf %75, %77 : vector<16x64xf32>
      %c0_47 = arith.constant 0 : index
      %c0_48 = arith.constant 0 : index
      %79 = vector.load %arg11[%c0_47, %c0_48] : memref<16x64xf32, #tpu.memory_space<vmem>>, vector<16x64xf32>
      tpu.vector_store %arg11[%c0_47, %c0_48], %78 {strides = array<i32>} : memref<16x64xf32, #tpu.memory_space<vmem>>, vector<16x64xf32>,
    } else {
    }
    return
  }
  func.func @transform_0(%arg0: i32) -> (i32, i32, i32) {
    %c0_i32 = arith.constant 0 : i32
    %c0_i32_0 = arith.constant 0 : i32
    %c0_i32_1 = arith.constant 0 : i32
    return %arg0, %c0_i32, %c0_i32_0 : i32, i32, i32
  }
  func.func @transform_1(%arg0: i32) -> (i32, i32) {
    %c0_i32 = arith.constant 0 : i32
    %c0_i32_0 = arith.constant 0 : i32
    %c0_i32_1 = arith.constant 0 : i32
    return %c0_i32, %c0_i32_0 : i32, i32
  }
  func.func @transform_2(%arg0: i32) -> (i32, i32) {
    %c0_i32 = arith.constant 0 : i32
    %c0_i32_0 = arith.constant 0 : i32
    %c0_i32_1 = arith.constant 0 : i32
    return %c0_i32, %c0_i32_0 : i32, i32
  }
  func.func @transform_3(%arg0: i32) -> (i32, i32) {
    %c0_i32 = arith.constant 0 : i32
    %c0_i32_0 = arith.constant 0 : i32
    %c0_i32_1 = arith.constant 0 : i32
    return %c0_i32, %c0_i32_0 : i32, i32
  }
  func.func @transform_4(%arg0: i32) -> (i32, i32) {
    %c0_i32 = arith.constant 0 : i32
    %c0_i32_0 = arith.constant 0 : i32
    %c0_i32_1 = arith.constant 0 : i32
    return %c0_i32, %c0_i32_0 : i32, i32
  }
  func.func @transform_5(%arg0: i32) -> (i32, i32) {
    %c0_i32 = arith.constant 0 : i32
    %c0_i32_0 = arith.constant 0 : i32
    %c0_i32_1 = arith.constant 0 : i32
    return %c0_i32, %c0_i32_0 : i32, i32
  }
  func.func @transform_6(%arg0: i32) -> (i32, i32) {
    %c0_i32 = arith.constant 0 : i32
    %c0_i32_0 = arith.constant 0 : i32
    %c0_i32_1 = arith.constant 0 : i32
    return %c0_i32, %c0_i32_0 : i32, i32
  }
  func.func @transform_7(%arg0: i32) -> (i32, i32) {
    %c0_i32 = arith.constant 0 : i32
    %c0_i32_0 = arith.constant 0 : i32
    %c0_i32_1 = arith.constant 0 : i32
    return %c0_i32, %c0_i32_0 : i32, i32
  }
  func.func @transform_8(%arg0: i32) -> (i32, i32) {
    %c0_i32 = arith.constant 0 : i32
    %c0_i32_0 = arith.constant 0 : i32
    %c0_i32_1 = arith.constant 0 : i32
    return %c0_i32, %c0_i32_0 : i32, i32
  }
  func.func @transform_9(%arg0: i32) -> (i32, i32) {
    %c0_i32 = arith.constant 0 : i32
    %c0_i32_0 = arith.constant 0 : i32
    %c0_i32_1 = arith.constant 0 : i32
    return %c0_i32, %c0_i32_0 : i32, i32
  }
  func.func @transform_10(%arg0: i32) -> (i32, i32) {
    %c0_i32 = arith.constant 0 : i32
    %c0_i32_0 = arith.constant 0 : i32
    %c0_i32_1 = arith.constant 0 : i32
    return %c0_i32, %c0_i32_0 : i32, i32
  }
}

</mosaic_0001>

<llo_original>
// kernel: tpu_custom_call.1
$region0: #{tpu_custom_call.1}
  #allocation0 [shape = 'u32[]', space=smem, size = 0x4, offset = 0x4, fixed_abs, tag = 'smem constant byte address 0x4 - core index']
  #allocation1 [shape = 'u32[144,128]{1,0:T(1,128)}', space=vmem, size = 0x12000, scoped, tag = 'internal scratch']
  #allocation2 [shape = 'f32[16,256]{1,0:T(8,128)}', space=vmem, size = 0x4000, scoped, tag = 'scratch operand']
  %s0 = inlined_call_operand.vmem [shape: bf16[2,9,144], index: 0, kind: input, shape index: {}]
  %s1 = inlined_call_operand.vmem [shape: bf16[144,256], index: 1, kind: input, shape index: {}]
  %s2 = inlined_call_operand.vmem [shape: bf16[144,256], index: 2, kind: input, shape index: {}]
  %s3 = inlined_call_operand.vmem [shape: f32[1,256], index: 3, kind: input, shape index: {}]
  %s4 = inlined_call_operand.vmem [shape: f32[1,8], index: 4, kind: input, shape index: {}]
  %s5 = inlined_call_operand.vmem [shape: f32[1,8], index: 5, kind: input, shape index: {}]
  %s6 = inlined_call_operand.vmem [shape: f32[256,8], index: 6, kind: input, shape index: {}]
  %s7 = inlined_call_operand.vmem [shape: f32[8,256], index: 7, kind: input, shape index: {}]
  %s8 = inlined_call_operand.vmem [shape: f32[128,64], index: 8, kind: input, shape index: {}]
  %s9 = inlined_call_operand.vmem [shape: f32[128,64], index: 9, kind: input, shape index: {}]
  %s10 = inlined_call_operand.hbm [shape: f32[16,64], index: 10, kind: output, shape index: {}]
  %s11 = sld [smem:[#allocation0]]
  $region54: #{tpu_custom_call.1} parent=0
    _
  %s13 = ssub.s32 1, %s11
  %s14 = scalar_select 0, %s13, %s11
  $region1: #{tpu_custom_call.1} parent=0
    #allocation3 [shape = 'u8[8192]{0}', space=vmem, size = 0x2000, scoped, tag = 'output window, operand 0, single buffered']
    #allocation4 [shape = 's32[1]{0}', space=sflag, size = 0x4, scoped, tag = 'scoped memory for tpu_custom_call.1']
    %15 = vsyncpa [#allocation4], 0
    // Predicated region
    $region2: #{tpu_custom_call.1} parent=1 // pred_check
      _
    $region3: #{tpu_custom_call.1} parent=1 // pred_check_branch
      %17 = sbr.rel (0) target = $region5
    $region4: #{tpu_custom_call.1} parent=1 // pred_region
      _
    $region5: #{tpu_custom_call.1} parent=1 // pred_fallthru
      _
    // Predicated region
    $region6: #{tpu_custom_call.1} parent=1 // pred_check
      _
    $region7: #{tpu_custom_call.1} parent=1 // pred_check_branch
      %19 = sbr.rel (0) target = $region9
    $region8: #{tpu_custom_call.1} parent=1 // pred_region
      _
    $region9: #{tpu_custom_call.1} parent=1 // pred_fallthru
      _
    // Predicated region
    $region10: #{tpu_custom_call.1} parent=1 // pred_check
      _
    $region11: #{tpu_custom_call.1} parent=1 // pred_check_branch
      %21 = sbr.rel (0) target = $region13
    $region12: #{tpu_custom_call.1} parent=1 // pred_region
      _
    $region13: #{tpu_custom_call.1} parent=1 // pred_fallthru
      _
    // Predicated region
    $region14: #{tpu_custom_call.1} parent=1 // pred_check
      _
    $region15: #{tpu_custom_call.1} parent=1 // pred_check_branch
      %23 = sbr.rel (0) target = $region17
    $region16: #{tpu_custom_call.1} parent=1 // pred_region
      _
    $region17: #{tpu_custom_call.1} parent=1 // pred_fallthru
      _
    // Predicated region
    $region18: #{tpu_custom_call.1} parent=1 // pred_check
      _
    $region19: #{tpu_custom_call.1} parent=1 // pred_check_branch
      %25 = sbr.rel (0) target = $region21
    $region20: #{tpu_custom_call.1} parent=1 // pred_region
      _
    $region21: #{tpu_custom_call.1} parent=1 // pred_fallthru
      _
    // Predicated region
    $region22: #{tpu_custom_call.1} parent=1 // pred_check
      _
    $region23: #{tpu_custom_call.1} parent=1 // pred_check_branch
      %27 = sbr.rel (0) target = $region25
    $region24: #{tpu_custom_call.1} parent=1 // pred_region
      _
    $region25: #{tpu_custom_call.1} parent=1 // pred_fallthru
      _
    // Predicated region
    $region26: #{tpu_custom_call.1} parent=1 // pred_check
      _
    $region27: #{tpu_custom_call.1} parent=1 // pred_check_branch
      %29 = sbr.rel (0) target = $region29
    $region28: #{tpu_custom_call.1} parent=1 // pred_region
      _
    $region29: #{tpu_custom_call.1} parent=1 // pred_fallthru
      _
    // Predicated region
    $region30: #{tpu_custom_call.1} parent=1 // pred_check
      _
    $region31: #{tpu_custom_call.1} parent=1 // pred_check_branch
      %31 = sbr.rel (0) target = $region33
    $region32: #{tpu_custom_call.1} parent=1 // pred_region
      _
    $region33: #{tpu_custom_call.1} parent=1 // pred_fallthru
      _
    // Predicated region
    $region34: #{tpu_custom_call.1} parent=1 // pred_check
      _
    $region35: #{tpu_custom_call.1} parent=1 // pred_check_branch
      %33 = sbr.rel (0) target = $region37
    $region36: #{tpu_custom_call.1} parent=1 // pred_region
      _
    $region37: #{tpu_custom_call.1} parent=1 // pred_fallthru
      _
    // Predicated region
    $region38: #{tpu_custom_call.1} parent=1 // pred_check
      _
    $region39: #{tpu_custom_call.1} parent=1 // pred_check_branch
      %35 = sbr.rel (0) target = $region41
    $region40: #{tpu_custom_call.1} parent=1 // pred_region
      _
    $region41: #{tpu_custom_call.1} parent=1 // pred_fallthru
      _
    %v37 = vld [vmem:[%s1] sm:$0xff]
    %v38 = vld [vmem:[%s1 + $0x8] sm:$0xff]
    %v39 = vld [vmem:[%s1 + $0x10] sm:$0xff]
    %v40 = vld [vmem:[%s1 + $0x18] sm:$0xff]
    %v41 = vld [vmem:[%s1 + $0x20] sm:$0xff]
    %v42 = vld [vmem:[%s1 + $0x28] sm:$0xff]
    %v43 = vld [vmem:[%s1 + $0x30] sm:$0xff]
    %v44 = vld [vmem:[%s1 + $0x38] sm:$0xff]
    %v45 = vld [vmem:[%s1 + $0x40] sm:$0xff]
    %v46 = vld [vmem:[%s1 + $0x48] sm:$0xff]
    %v47 = vld [vmem:[%s1 + $0x50] sm:$0xff]
    %v48 = vld [vmem:[%s1 + $0x58] sm:$0xff]
    %v49 = vld [vmem:[%s1 + $0x60] sm:$0xff]
    %v50 = vld [vmem:[%s1 + $0x68] sm:$0xff]
    %v51 = vld [vmem:[%s1 + $0x70] sm:$0xff]
    %v52 = vld [vmem:[%s1 + $0x78] sm:$0xff]
    %v53 = vld [vmem:[%s1 + $0x80] sm:$0xff]
    %v54 = vld [vmem:[%s1 + $0x88] sm:$0xff]
    %v55 = vld [vmem:[%s2] sm:$0xff]
    %v56 = vld [vmem:[%s2 + $0x8] sm:$0xff]
    %v57 = vld [vmem:[%s2 + $0x10] sm:$0xff]
    %v58 = vld [vmem:[%s2 + $0x18] sm:$0xff]
    %v59 = vld [vmem:[%s2 + $0x20] sm:$0xff]
    %v60 = vld [vmem:[%s2 + $0x28] sm:$0xff]
    %v61 = vld [vmem:[%s2 + $0x30] sm:$0xff]
    %v62 = vld [vmem:[%s2 + $0x38] sm:$0xff]
    %v63 = vld [vmem:[%s2 + $0x40] sm:$0xff]
    %v64 = vld [vmem:[%s2 + $0x48] sm:$0xff]
    %v65 = vld [vmem:[%s2 + $0x50] sm:$0xff]
    %v66 = vld [vmem:[%s2 + $0x58] sm:$0xff]
    %v67 = vld [vmem:[%s2 + $0x60] sm:$0xff]
    %v68 = vld [vmem:[%s2 + $0x68] sm:$0xff]
    %v69 = vld [vmem:[%s2 + $0x70] sm:$0xff]
    %v70 = vld [vmem:[%s2 + $0x78] sm:$0xff]
    %v71 = vld [vmem:[%s2 + $0x80] sm:$0xff]
    %v72 = vld [vmem:[%s2 + $0x88] sm:$0xff]
    %v73 = vld [vmem:[%s3] sm:$0x3]
    %v74 = vld [vmem:[%s0] sm:$0xff]
    %v75 = vld [vmem:[%s0 + $0x8] sm:$0x11]
    %v78 = vunpack.c.l.b16 %v74
    %v79 = vunpack.c.h.b16 %v74
    %v80 = vunpack.c.l.b16 %v75
    %v81 = vunpack.c.h.b16 %v75
    %v82 = vpack.c.b16 %v80, %v78
    %v83 = vpack.c.b16 %v81, %v79
    %v85 = vshrl.u32 %v82, 16
    %v87 = vshll.u32 %v82, 16
    %v89 = vrot.slane %v87, 1
    %v90 = vor.u32 %v85, %v89
    %v92 = vshrl.u32 %v83, 16
    %v94 = vshll.u32 %v83, 16
    %v96 = vrot.slane %v94, 1
    %v97 = vor.u32 %v92, %v96
    %v117 = vunpack.c.l.b16 %v55
    %v118 = vunpack.c.h.b16 %v55
    %v119 = vunpack.c.l.b16 %v56
    %v120 = vunpack.c.h.b16 %v56
    %v121 = vunpack.c.l.b16 %v57
    %v122 = vunpack.c.h.b16 %v57
    %v123 = vunpack.c.l.b16 %v58
    %v124 = vunpack.c.h.b16 %v58
    %v125 = vunpack.c.l.b16 %v59
    %v126 = vunpack.c.h.b16 %v59
    %v127 = vunpack.c.l.b16 %v60
    %v128 = vunpack.c.h.b16 %v60
    %v129 = vunpack.c.l.b16 %v61
    %v130 = vunpack.c.h.b16 %v61
    %v131 = vunpack.c.l.b16 %v62
    %v132 = vunpack.c.h.b16 %v62
    %v133 = vunpack.c.l.b16 %v63
    %v134 = vunpack.c.h.b16 %v63
    %v135 = vunpack.c.l.b16 %v64
    %v136 = vunpack.c.h.b16 %v64
    %v137 = vunpack.c.l.b16 %v65
    %v138 = vunpack.c.h.b16 %v65
    %v139 = vunpack.c.l.b16 %v66
    %v140 = vunpack.c.h.b16 %v66
    %v141 = vunpack.c.l.b16 %v67
    %v142 = vunpack.c.h.b16 %v67
    %v143 = vunpack.c.l.b16 %v68
    %v144 = vunpack.c.h.b16 %v68
    %v145 = vunpack.c.l.b16 %v69
    %v146 = vunpack.c.h.b16 %v69
    %v147 = vunpack.c.l.b16 %v70
    %v148 = vunpack.c.h.b16 %v70
    %v149 = vunpack.c.l.b16 %v71
    %v150 = vunpack.c.h.b16 %v71
    %v151 = vunpack.c.l.b16 %v72
    %v152 = vunpack.c.h.b16 %v72
    %v153 = vpack.c.b16 %v119, %v117
    %v154 = vpack.c.b16 %v120, %v118
    %v155 = vpack.c.b16 %v123, %v121
    %v156 = vpack.c.b16 %v124, %v122
    %v157 = vpack.c.b16 %v127, %v125
    %v158 = vpack.c.b16 %v128, %v126
    %v159 = vpack.c.b16 %v131, %v129
    %v160 = vpack.c.b16 %v132, %v130
    %v161 = vpack.c.b16 %v135, %v133
    %v162 = vpack.c.b16 %v136, %v134
    %v163 = vpack.c.b16 %v139, %v137
    %v164 = vpack.c.b16 %v140, %v138
    %v165 = vpack.c.b16 %v143, %v141
    %v166 = vpack.c.b16 %v144, %v142
    %v167 = vpack.c.b16 %v147, %v145
    %v168 = vpack.c.b16 %v148, %v146
    %v169 = vpack.c.b16 %v151, %v149
    %v170 = vpack.c.b16 %v152, %v150
    %vm189 = vcmask 130048
    %v191 = vsel %vm189, %v97, 0
    %193 = vmatprep.subr.bf16.mxu0 %v154
    %194 = vmatpush1.bf16.msra.mxu0 %v153
    %195 = vmatprep.subr.bf16.mxu0 %v156
    %196 = vmatpush1.bf16.msra.mxu0 %v155
    %197 = vmatprep.subr.bf16.mxu0 %v158
    %198 = vmatpush1.bf16.msra.mxu0 %v157
    %199 = vmatprep.subr.bf16.mxu0 %v160
    %200 = vmatpush1.bf16.msra.mxu0 %v159
    %201 = vmatprep.subr.bf16.mxu0 %v162
    %202 = vmatpush1.bf16.msra.mxu0 %v161
    %203 = vmatprep.subr.bf16.mxu0 %v164
    %204 = vmatpush1.bf16.msra.mxu0 %v163
    %205 = vmatprep.subr.bf16.mxu0 %v166
    %206 = vmatpush1.bf16.msra.mxu0 %v165
    %207 = vmatprep.subr.bf16.mxu0 %v168
    %208 = vmatpush1.bf16.msra.mxu0 %v167
    %209 = vmatprep.subr.bf16.mxu0 %v170
    %210 = vmatpush1.bf16.msra.mxu0 %v169
    %211 = vmatprep.subr.bf16.mxu0 0
    %212 = vmatpush1.bf16.msra.mxu0 0
    %213 = vmatprep.subr.bf16.mxu0 0
    %214 = vmatpush1.bf16.msra.mxu0 0
    %215 = vmatprep.subr.bf16.mxu0 0
    %216 = vmatpush1.bf16.msra.mxu0 0
    %217 = vmatprep.subr.bf16.mxu0 0
    %218 = vmatpush1.bf16.msra.mxu0 0
    %219 = vmatprep.subr.bf16.mxu0 0
    %220 = vmatpush1.bf16.msra.mxu0 0
    %221 = vmatprep.subr.bf16.mxu0 0
    %222 = vmatpush1.bf16.msra.mxu0 0
    %223 = vmatprep.subr.bf16.mxu0 0
    %224 = vmatpush1.bf16.msra.mxu0 0
    %225 = vmatprep.mubr.bf16.mxu0 %v191
    %226 = vmatmul.mubr.bf16.gmra.mrb[0].mxu0 %v90
    %v227 = vpop.f32.mrb[0].mxu0
    %v228 = vadd.f32 0.0, %v227
    %v229 = vpop.f32.mrb[0].mxu0
    %v230 = vadd.f32 0.0, %v229
    %v231 = vpop.f32.mrb[0].mxu0
    %v232 = vpop.f32.mrb[0].mxu0
    %233 = vdwg.mxu0
    %v234 = vpack.c.b16 %v78, %v78
    %v235 = vpack.c.b16 %v79, %v79
    %v255 = vunpack.c.l.b16 %v37
    %v256 = vunpack.c.h.b16 %v37
    %v257 = vunpack.c.l.b16 %v38
    %v258 = vunpack.c.h.b16 %v38
    %v259 = vunpack.c.l.b16 %v39
    %v260 = vunpack.c.h.b16 %v39
    %v261 = vunpack.c.l.b16 %v40
    %v262 = vunpack.c.h.b16 %v40
    %v263 = vunpack.c.l.b16 %v41
    %v264 = vunpack.c.h.b16 %v41
    %v265 = vunpack.c.l.b16 %v42
    %v266 = vunpack.c.h.b16 %v42
    %v267 = vunpack.c.l.b16 %v43
    %v268 = vunpack.c.h.b16 %v43
    %v269 = vunpack.c.l.b16 %v44
    %v270 = vunpack.c.h.b16 %v44
    %v271 = vunpack.c.l.b16 %v45
    %v272 = vunpack.c.h.b16 %v45
    %v273 = vunpack.c.l.b16 %v46
    %v274 = vunpack.c.h.b16 %v46
    %v275 = vunpack.c.l.b16 %v47
    %v276 = vunpack.c.h.b16 %v47
    %v277 = vunpack.c.l.b16 %v48
    %v278 = vunpack.c.h.b16 %v48
    %v279 = vunpack.c.l.b16 %v49
    %v280 = vunpack.c.h.b16 %v49
    %v281 = vunpack.c.l.b16 %v50
    %v282 = vunpack.c.h.b16 %v50
    %v283 = vunpack.c.l.b16 %v51
    %v284 = vunpack.c.h.b16 %v51
    %v285 = vunpack.c.l.b16 %v52
    %v286 = vunpack.c.h.b16 %v52
    %v287 = vunpack.c.l.b16 %v53
    %v288 = vunpack.c.h.b16 %v53
    %v289 = vunpack.c.l.b16 %v54
    %v290 = vunpack.c.h.b16 %v54
    %v291 = vpack.c.b16 %v257, %v255
    %v292 = vpack.c.b16 %v258, %v256
    %v293 = vpack.c.b16 %v261, %v259
    %v294 = vpack.c.b16 %v262, %v260
    %v295 = vpack.c.b16 %v265, %v263
    %v296 = vpack.c.b16 %v266, %v264
    %v297 = vpack.c.b16 %v269, %v267
    %v298 = vpack.c.b16 %v270, %v268
    %v299 = vpack.c.b16 %v273, %v271
    %v300 = vpack.c.b16 %v274, %v272
    %v301 = vpack.c.b16 %v277, %v275
    %v302 = vpack.c.b16 %v278, %v276
    %v303 = vpack.c.b16 %v281, %v279
    %v304 = vpack.c.b16 %v282, %v280
    %v305 = vpack.c.b16 %v285, %v283
    %v306 = vpack.c.b16 %v286, %v284
    %v307 = vpack.c.b16 %v289, %v287
    %v308 = vpack.c.b16 %v290, %v288
    %v328 = vsel %vm189, %v235, 0
    %330 = vmatprep.subr.bf16.mxu0 %v292
    %331 = vmatpush1.bf16.msra.mxu0 %v291
    %332 = vmatprep.subr.bf16.mxu0 %v294
    %333 = vmatpush1.bf16.msra.mxu0 %v293
    %334 = vmatprep.subr.bf16.mxu0 %v296
    %335 = vmatpush1.bf16.msra.mxu0 %v295
    %336 = vmatprep.subr.bf16.mxu0 %v298
    %337 = vmatpush1.bf16.msra.mxu0 %v297
    %338 = vmatprep.subr.bf16.mxu0 %v300
    %339 = vmatpush1.bf16.msra.mxu0 %v299
    %340 = vmatprep.subr.bf16.mxu0 %v302
    %341 = vmatpush1.bf16.msra.mxu0 %v301
    %342 = vmatprep.subr.bf16.mxu0 %v304
    %343 = vmatpush1.bf16.msra.mxu0 %v303
    %344 = vmatprep.subr.bf16.mxu0 %v306
    %345 = vmatpush1.bf16.msra.mxu0 %v305
    %346 = vmatprep.subr.bf16.mxu0 %v308
    %347 = vmatpush1.bf16.msra.mxu0 %v307
    %348 = vmatprep.subr.bf16.mxu0 0
    %349 = vmatpush1.bf16.msra.mxu0 0
    %350 = vmatprep.subr.bf16.mxu0 0
    %351 = vmatpush1.bf16.msra.mxu0 0
    %352 = vmatprep.subr.bf16.mxu0 0
    %353 = vmatpush1.bf16.msra.mxu0 0
    %354 = vmatprep.subr.bf16.mxu0 0
    %355 = vmatpush1.bf16.msra.mxu0 0
    %356 = vmatprep.subr.bf16.mxu0 0
    %357 = vmatpush1.bf16.msra.mxu0 0
    %358 = vmatprep.subr.bf16.mxu0 0
    %359 = vmatpush1.bf16.msra.mxu0 0
    %360 = vmatprep.subr.bf16.mxu0 0
    %361 = vmatpush1.bf16.msra.mxu0 0
    %362 = vmatprep.mubr.bf16.mxu0 %v328
    %363 = vmatmul.mubr.bf16.gmra.mrb[0].mxu0 %v234
    %v364 = vpop.f32.mrb[0].mxu0
    %v365 = vadd.f32 %v228, %v364
    %v366 = vpop.f32.mrb[0].mxu0
    %v367 = vadd.f32 %v230, %v366
    %v368 = vpop.f32.mrb[0].mxu0
    %v369 = vpop.f32.mrb[0].mxu0
    %370 = vdwg.mxu0
    %v372 = vlaneseq
    %v373 = vshrl.u32 %v372, 7
    %v374 = vsub.s32 0, %v373
    %v375 = vrot.slane %v73, %v374
    %v376 = vlaneseq
    %v377 = vshrl.u32 %v376, 7
    %v378 = vsub.s32 1, %v377
    %v379 = vrot.slane %v73, %v378
    %v382 = vadd.f32 %v365, %v375
    %v383 = vadd.f32 %v367, %v379
    %v384 = vmax.f32 %v382, 0.0
    %v385 = vmax.f32 %v383, 0.0
    %s386 = smul.u32 0, 16
    %s387 = sshra.s32 %s386, 3
    %s388 = sand.u32 %s386, 7
    %s389 = smul.u32 %s387, 2
    %s390 = smul.addr %s389, 8
    %s391 = scalar_lea.vmem [#allocation2], %s390
    %392 = vst [vmem:[%s391] sm:$0xff] %v384
    %393 = vst [vmem:[%s391 + $0x8] sm:$0xff] %v385
    %s394 = scalar_lea.vmem %s0, 16
    %v395 = vld [vmem:[%s394] sm:$0xff]
    %v396 = vld [vmem:[%s394 + $0x8] sm:$0x11]
    %v399 = vunpack.c.l.b16 %v395
    %v400 = vunpack.c.h.b16 %v395
    %v401 = vunpack.c.l.b16 %v396
    %v402 = vunpack.c.h.b16 %v396
    %v403 = vpack.c.b16 %v401, %v399
    %v404 = vpack.c.b16 %v402, %v400
    %v406 = vshrl.u32 %v403, 16
    %v408 = vshll.u32 %v403, 16
    %v410 = vrot.slane %v408, 1
    %v411 = vor.u32 %v406, %v410
    %v413 = vshrl.u32 %v404, 16
    %v415 = vshll.u32 %v404, 16
    %v417 = vrot.slane %v415, 1
    %v418 = vor.u32 %v413, %v417
    %v421 = vsel %vm189, %v418, 0
    %423 = vmatprep.subr.bf16.mxu0 %v154
    %424 = vmatpush1.bf16.msra.mxu0 %v153
    %425 = vmatprep.subr.bf16.mxu0 %v156
    %426 = vmatpush1.bf16.msra.mxu0 %v155
    %427 = vmatprep.subr.bf16.mxu0 %v158
    %428 = vmatpush1.bf16.msra.mxu0 %v157
    %429 = vmatprep.subr.bf16.mxu0 %v160
    %430 = vmatpush1.bf16.msra.mxu0 %v159
    %431 = vmatprep.subr.bf16.mxu0 %v162
    %432 = vmatpush1.bf16.msra.mxu0 %v161
    %433 = vmatprep.subr.bf16.mxu0 %v164
    %434 = vmatpush1.bf16.msra.mxu0 %v163
    %435 = vmatprep.subr.bf16.mxu0 %v166
    %436 = vmatpush1.bf16.msra.mxu0 %v165
    %437 = vmatprep.subr.bf16.mxu0 %v168
    %438 = vmatpush1.bf16.msra.mxu0 %v167
    %439 = vmatprep.subr.bf16.mxu0 %v170
    %440 = vmatpush1.bf16.msra.mxu0 %v169
    %441 = vmatprep.subr.bf16.mxu0 0
    %442 = vmatpush1.bf16.msra.mxu0 0
    %443 = vmatprep.subr.bf16.mxu0 0
    %444 = vmatpush1.bf16.msra.mxu0 0
    %445 = vmatprep.subr.bf16.mxu0 0
    %446 = vmatpush1.bf16.msra.mxu0 0
    %447 = vmatprep.subr.bf16.mxu0 0
    %448 = vmatpush1.bf16.msra.mxu0 0
    %449 = vmatprep.subr.bf16.mxu0 0
    %450 = vmatpush1.bf16.msra.mxu0 0
    %451 = vmatprep.subr.bf16.mxu0 0
    %452 = vmatpush1.bf16.msra.mxu0 0
    %453 = vmatprep.subr.bf16.mxu0 0
    %454 = vmatpush1.bf16.msra.mxu0 0
    %455 = vmatprep.mubr.bf16.mxu0 %v421
    %456 = vmatmul.mubr.bf16.gmra.mrb[0].mxu0 %v411
    %v457 = vpop.f32.mrb[0].mxu0
    %v458 = vadd.f32 0.0, %v457
    %v459 = vpop.f32.mrb[0].mxu0
    %v460 = vadd.f32 0.0, %v459
    %v461 = vpop.f32.mrb[0].mxu0
    %v462 = vpop.f32.mrb[0].mxu0
    %463 = vdwg.mxu0
    %v464 = vpack.c.b16 %v399, %v399
    %v465 = vpack.c.b16 %v400, %v400
    %v468 = vsel %vm189, %v465, 0
    %470 = vmatprep.subr.bf16.mxu0 %v292
    %471 = vmatpush1.bf16.msra.mxu0 %v291
    %472 = vmatprep.subr.bf16.mxu0 %v294
    %473 = vmatpush1.bf16.msra.mxu0 %v293
    %474 = vmatprep.subr.bf16.mxu0 %v296
    %475 = vmatpush1.bf16.msra.mxu0 %v295
    %476 = vmatprep.subr.bf16.mxu0 %v298
    %477 = vmatpush1.bf16.msra.mxu0 %v297
    %478 = vmatprep.subr.bf16.mxu0 %v300
    %479 = vmatpush1.bf16.msra.mxu0 %v299
    %480 = vmatprep.subr.bf16.mxu0 %v302
    %481 = vmatpush1.bf16.msra.mxu0 %v301
    %482 = vmatprep.subr.bf16.mxu0 %v304
    %483 = vmatpush1.bf16.msra.mxu0 %v303
    %484 = vmatprep.subr.bf16.mxu0 %v306
    %485 = vmatpush1.bf16.msra.mxu0 %v305
    %486 = vmatprep.subr.bf16.mxu0 %v308
    %487 = vmatpush1.bf16.msra.mxu0 %v307
    %488 = vmatprep.subr.bf16.mxu0 0
    %489 = vmatpush1.bf16.msra.mxu0 0
    %490 = vmatprep.subr.bf16.mxu0 0
    %491 = vmatpush1.bf16.msra.mxu0 0
    %492 = vmatprep.subr.bf16.mxu0 0
    %493 = vmatpush1.bf16.msra.mxu0 0
    %494 = vmatprep.subr.bf16.mxu0 0
    %495 = vmatpush1.bf16.msra.mxu0 0
    %496 = vmatprep.subr.bf16.mxu0 0
    %497 = vmatpush1.bf16.msra.mxu0 0
    %498 = vmatprep.subr.bf16.mxu0 0
    %499 = vmatpush1.bf16.msra.mxu0 0
    %500 = vmatprep.subr.bf16.mxu0 0
    %501 = vmatpush1.bf16.msra.mxu0 0
    %502 = vmatprep.mubr.bf16.mxu0 %v468
    %503 = vmatmul.mubr.bf16.gmra.mrb[0].mxu0 %v464
    %v504 = vpop.f32.mrb[0].mxu0
    %v505 = vadd.f32 %v458, %v504
    %v506 = vpop.f32.mrb[0].mxu0
    %v507 = vadd.f32 %v460, %v506
    %v508 = vpop.f32.mrb[0].mxu0
    %v509 = vpop.f32.mrb[0].mxu0
    %510 = vdwg.mxu0
    %v511 = vadd.f32 %v505, %v375
    %v512 = vadd.f32 %v507, %v379
    %v513 = vmax.f32 %v511, 0.0
    %v514 = vmax.f32 %v512, 0.0
    %s515 = smul.u32 0, 2
    %s516 = sadd.s32 %s515, 1
    %s517 = smul.u32 %s516, 8
    %s518 = sshra.s32 %s517, 3
    %s519 = sand.u32 %s517, 7
    %s520 = smul.u32 %s518, 2
    %s521 = smul.addr %s520, 8
    %s522 = scalar_lea.vmem [#allocation2], %s521
    %523 = vst [vmem:[%s522] sm:$0xff] %v513
    %524 = vst [vmem:[%s522 + $0x8] sm:$0xff] %v514
    %p525 = scmp.eq.s32.totalorder 0, 0
    // Predicated region
    $region42: #{tpu_custom_call.1} parent=1 // pred_check
      %p526 = pneg %p525
    $region43: #{tpu_custom_call.1} parent=1 // pred_check_branch
      %528 = sbr.rel (%p526) target = $region45
    $region44: #{tpu_custom_call.1} parent=1 // pred_region
      %v529 = vld [vmem:[#allocation2] sm:$0xff]
      %v530 = vld [vmem:[#allocation2 + $0x8] sm:$0xff]
      %v531 = vld [vmem:[#allocation2 + $0x10] sm:$0xff]
      %v532 = vld [vmem:[#allocation2 + $0x18] sm:$0xff]
      %v533 = vld [vmem:[%s6] sm:$0xff]
      %v534 = vld [vmem:[%s6 + $0x8] sm:$0xff]
      %v535 = vld [vmem:[%s6 + $0x10] sm:$0xff]
      %v536 = vld [vmem:[%s6 + $0x18] sm:$0xff]
      %v537 = vld [vmem:[%s6 + $0x20] sm:$0xff]
      %v538 = vld [vmem:[%s6 + $0x28] sm:$0xff]
      %v539 = vld [vmem:[%s6 + $0x30] sm:$0xff]
      %v540 = vld [vmem:[%s6 + $0x38] sm:$0xff]
      %v541 = vld [vmem:[%s6 + $0x40] sm:$0xff]
      %v542 = vld [vmem:[%s6 + $0x48] sm:$0xff]
      %v543 = vld [vmem:[%s6 + $0x50] sm:$0xff]
      %v544 = vld [vmem:[%s6 + $0x58] sm:$0xff]
      %v545 = vld [vmem:[%s6 + $0x60] sm:$0xff]
      %v546 = vld [vmem:[%s6 + $0x68] sm:$0xff]
      %v547 = vld [vmem:[%s6 + $0x70] sm:$0xff]
      %v548 = vld [vmem:[%s6 + $0x78] sm:$0xff]
      %v549 = vld [vmem:[%s6 + $0x80] sm:$0xff]
      %v550 = vld [vmem:[%s6 + $0x88] sm:$0xff]
      %v551 = vld [vmem:[%s6 + $0x90] sm:$0xff]
      %v552 = vld [vmem:[%s6 + $0x98] sm:$0xff]
      %v553 = vld [vmem:[%s6 + $0xa0] sm:$0xff]
      %v554 = vld [vmem:[%s6 + $0xa8] sm:$0xff]
      %v555 = vld [vmem:[%s6 + $0xb0] sm:$0xff]
      %v556 = vld [vmem:[%s6 + $0xb8] sm:$0xff]
      %v557 = vld [vmem:[%s6 + $0xc0] sm:$0xff]
      %v558 = vld [vmem:[%s6 + $0xc8] sm:$0xff]
      %v559 = vld [vmem:[%s6 + $0xd0] sm:$0xff]
      %v560 = vld [vmem:[%s6 + $0xd8] sm:$0xff]
      %v561 = vld [vmem:[%s6 + $0xe0] sm:$0xff]
      %v562 = vld [vmem:[%s6 + $0xe8] sm:$0xff]
      %v563 = vld [vmem:[%s6 + $0xf0] sm:$0xff]
      %v564 = vld [vmem:[%s6 + $0xf8] sm:$0xff]
      %v565 = vld [vmem:[%s7] sm:$0xff]
      %v566 = vld [vmem:[%s7 + $0x8] sm:$0xff]
      %v567 = vadd.f32 %v529, %v531
      %v568 = vrot.slane %v567, 4
      %v569 = vadd.f32 %v567, %v568
      %v570 = vrot.slane %v569, 2
      %v571 = vadd.f32 %v569, %v570
      %v572 = vrot.slane %v571, 1
      %v573 = vadd.f32 %v571, %v572
      %v574 = vadd.f32 %v530, %v532
      %v575 = vrot.slane %v574, 4
      %v576 = vadd.f32 %v574, %v575
      %v577 = vrot.slane %v576, 2
      %v578 = vadd.f32 %v576, %v577
      %v579 = vrot.slane %v578, 1
      %v580 = vadd.f32 %v578, %v579
      %581 = vmatprep.subr.mxu0 0.0
      %582 = vmatpush1.msra.mxu0 %v533
      %583 = vmatprep.subr.mxu0 0.0
      %584 = vmatpush1.msra.mxu0 %v534
      %585 = vmatprep.subr.mxu0 0.0
      %586 = vmatpush1.msra.mxu0 %v535
      %587 = vmatprep.subr.mxu0 0.0
      %588 = vmatpush1.msra.mxu0 %v536
      %589 = vmatprep.subr.mxu0 0.0
      %590 = vmatpush1.msra.mxu0 %v537
      %591 = vmatprep.subr.mxu0 0.0
      %592 = vmatpush1.msra.mxu0 %v538
      %593 = vmatprep.subr.mxu0 0.0
      %594 = vmatpush1.msra.mxu0 %v539
      %595 = vmatprep.subr.mxu0 0.0
      %596 = vmatpush1.msra.mxu0 %v540
      %597 = vmatprep.subr.mxu0 0.0
      %598 = vmatpush1.msra.mxu0 %v541
      %599 = vmatprep.subr.mxu0 0.0
      %600 = vmatpush1.msra.mxu0 %v542
      %601 = vmatprep.subr.mxu0 0.0
      %602 = vmatpush1.msra.mxu0 %v543
      %603 = vmatprep.subr.mxu0 0.0
      %604 = vmatpush1.msra.mxu0 %v544
      %605 = vmatprep.subr.mxu0 0.0
      %606 = vmatpush1.msra.mxu0 %v545
      %607 = vmatprep.subr.mxu0 0.0
      %608 = vmatpush1.msra.mxu0 %v546
      %609 = vmatprep.subr.mxu0 0.0
      %610 = vmatpush1.msra.mxu0 %v547
      %611 = vmatprep.subr.mxu0 0.0
      %612 = vmatpush1.msra.mxu0 %v548
      %613 = vmatprep.subr.mxu0 0.0
      %614 = vmatpush1.msra.mxu0 %v549
      %615 = vmatprep.subr.mxu0 0.0
      %616 = vmatpush1.msra.mxu0 %v550
      %617 = vmatprep.subr.mxu0 0.0
      %618 = vmatpush1.msra.mxu0 %v551
      %619 = vmatprep.subr.mxu0 0.0
      %620 = vmatpush1.msra.mxu0 %v552
      %621 = vmatprep.subr.mxu0 0.0
      %622 = vmatpush1.msra.mxu0 %v553
      %623 = vmatprep.subr.mxu0 0.0
      %624 = vmatpush1.msra.mxu0 %v554
      %625 = vmatprep.subr.mxu0 0.0
      %626 = vmatpush1.msra.mxu0 %v555
      %627 = vmatprep.subr.mxu0 0.0
      %628 = vmatpush1.msra.mxu0 %v556
      %629 = vmatprep.subr.mxu0 0.0
      %630 = vmatpush1.msra.mxu0 %v557
      %631 = vmatprep.subr.mxu0 0.0
      %632 = vmatpush1.msra.mxu0 %v558
      %633 = vmatprep.subr.mxu0 0.0
      %634 = vmatpush1.msra.mxu0 %v559
      %635 = vmatprep.subr.mxu0 0.0
      %636 = vmatpush1.msra.mxu0 %v560
      %637 = vmatprep.subr.mxu0 0.0
      %638 = vmatpush1.msra.mxu0 %v561
      %639 = vmatprep.subr.mxu0 0.0
      %640 = vmatpush1.msra.mxu0 %v562
      %641 = vmatprep.subr.mxu0 0.0
      %642 = vmatpush1.msra.mxu0 %v563
      %643 = vmatprep.subr.mxu0 0.0
      %644 = vmatpush1.msra.mxu0 %v564
      %645 = vmatprep.mubr.f32.mxu0 %v580
      %646 = vmatmul.mubr.f32.gmra.mrb[0].mxu0 %v573
      %v647 = vpop.f32.mrb[0].mxu0
      %v648 = vadd.f32 0.0, %v647
      %v649 = vpop.f32.mrb[0].mxu0
      %650 = vdwg.mxu0
      %v651 = vmul.f32 %v648, 0.001953125
      %vm652 = vcmask 64512
      %v654 = vsel %vm652, %v651, 0
      %656 = vmatprep.subr.mxu0 %v566
      %657 = vmatpush1.msra.mxu0 %v565
      %658 = vmatprep.subr.mxu0 0.0
      %659 = vmatpush1.msra.mxu0 0.0
      %660 = vmatprep.subr.mxu0 0.0
      %661 = vmatpush1.msra.mxu0 0.0
      %662 = vmatprep.subr.mxu0 0.0
      %663 = vmatpush1.msra.mxu0 0.0
      %664 = vmatprep.subr.mxu0 0.0
      %665 = vmatpush1.msra.mxu0 0.0
      %666 = vmatprep.subr.mxu0 0.0
      %667 = vmatpush1.msra.mxu0 0.0
      %668 = vmatprep.subr.mxu0 0.0
      %669 = vmatpush1.msra.mxu0 0.0
      %670 = vmatprep.subr.mxu0 0.0
      %671 = vmatpush1.msra.mxu0 0.0
      %672 = vmatprep.subr.mxu0 0.0
      %673 = vmatpush1.msra.mxu0 0.0
      %674 = vmatprep.subr.mxu0 0.0
      %675 = vmatpush1.msra.mxu0 0.0
      %676 = vmatprep.subr.mxu0 0.0
      %677 = vmatpush1.msra.mxu0 0.0
      %678 = vmatprep.subr.mxu0 0.0
      %679 = vmatpush1.msra.mxu0 0.0
      %680 = vmatprep.subr.mxu0 0.0
      %681 = vmatpush1.msra.mxu0 0.0
      %682 = vmatprep.subr.mxu0 0.0
      %683 = vmatpush1.msra.mxu0 0.0
      %684 = vmatprep.subr.mxu0 0.0
      %685 = vmatpush1.msra.mxu0 0.0
      %686 = vmatprep.subr.mxu0 0.0
      %687 = vmatpush1.msra.mxu0 0.0
      %688 = vmatprep.subr.mxu0 0.0
      %689 = vmatpush1.msra.mxu0 0.0
      %690 = vmatprep.subr.mxu0 0.0
      %691 = vmatpush1.msra.mxu0 0.0
      %692 = vmatprep.subr.mxu0 0.0
      %693 = vmatpush1.msra.mxu0 0.0
      %694 = vmatprep.subr.mxu0 0.0
      %695 = vmatpush1.msra.mxu0 0.0
      %696 = vmatprep.subr.mxu0 0.0
      %697 = vmatpush1.msra.mxu0 0.0
      %698 = vmatprep.subr.mxu0 0.0
      %699 = vmatpush1.msra.mxu0 0.0
      %700 = vmatprep.subr.mxu0 0.0
      %701 = vmatpush1.msra.mxu0 0.0
      %702 = vmatprep.subr.mxu0 0.0
      %703 = vmatpush1.msra.mxu0 0.0
      %704 = vmatprep.subr.mxu0 0.0
      %705 = vmatpush1.msra.mxu0 0.0
      %706 = vmatprep.subr.mxu0 0.0
      %707 = vmatpush1.msra.mxu0 0.0
      %708 = vmatprep.subr.mxu0 0.0
      %709 = vmatpush1.msra.mxu0 0.0
      %710 = vmatprep.subr.mxu0 0.0
      %711 = vmatpush1.msra.mxu0 0.0
      %712 = vmatprep.subr.mxu0 0.0
      %713 = vmatpush1.msra.mxu0 0.0
      %714 = vmatprep.subr.mxu0 0.0
      %715 = vmatpush1.msra.mxu0 0.0
      %716 = vmatprep.subr.mxu0 0.0
      %717 = vmatpush1.msra.mxu0 0.0
      %718 = vmatprep.subr.mxu0 0.0
      %719 = vmatpush1.msra.mxu0 0.0
      %720 = vmatprep.mubr.f32.mxu0 0.0
      %721 = vmatmul.mubr.f32.gmra.mrb[0].mxu0 %v654
      %v722 = vpop.f32.mrb[0].mxu0
      %v723 = vadd.f32 0.0, %v722
      %v724 = vpop.f32.mrb[0].mxu0
      %v725 = vadd.f32 0.0, %v724
      %726 = vdwg.mxu0
      %v727 = vlaneseq
      %v728 = vshrl.u32 %v727, 7
      %v729 = vsub.s32 0, %v728
      %v730 = vrot.slane %v723, %v729
      %v731 = vlaneseq
      %v732 = vshrl.u32 %v731, 7
      %v733 = vsub.s32 0, %v732
      %v734 = vrot.slane %v725, %v733
      %v735 = vsub.f32 %v529, %v730
      %v736 = vsub.f32 %v530, %v734
      %v737 = vsub.f32 %v531, %v730
      %v738 = vsub.f32 %v532, %v734
      %v739 = vmul.f32 %v735, %v735
      %v740 = vmul.f32 %v736, %v736
      %v741 = vmul.f32 %v737, %v737
      %v742 = vmul.f32 %v738, %v738
      %v743 = vadd.f32 %v739, %v741
      %v744 = vrot.slane %v743, 4
      %v745 = vadd.f32 %v743, %v744
      %v746 = vrot.slane %v745, 2
      %v747 = vadd.f32 %v745, %v746
      %v748 = vrot.slane %v747, 1
      %v749 = vadd.f32 %v747, %v748
      %v750 = vadd.f32 %v740, %v742
      %v751 = vrot.slane %v750, 4
      %v752 = vadd.f32 %v750, %v751
      %v753 = vrot.slane %v752, 2
      %v754 = vadd.f32 %v752, %v753
      %v755 = vrot.slane %v754, 1
      %v756 = vadd.f32 %v754, %v755
      %757 = vmatprep.subr.mxu0 0.0
      %758 = vmatpush1.msra.mxu0 %v533
      %759 = vmatprep.subr.mxu0 0.0
      %760 = vmatpush1.msra.mxu0 %v534
      %761 = vmatprep.subr.mxu0 0.0
      %762 = vmatpush1.msra.mxu0 %v535
      %763 = vmatprep.subr.mxu0 0.0
      %764 = vmatpush1.msra.mxu0 %v536
      %765 = vmatprep.subr.mxu0 0.0
      %766 = vmatpush1.msra.mxu0 %v537
      %767 = vmatprep.subr.mxu0 0.0
      %768 = vmatpush1.msra.mxu0 %v538
      %769 = vmatprep.subr.mxu0 0.0
      %770 = vmatpush1.msra.mxu0 %v539
      %771 = vmatprep.subr.mxu0 0.0
      %772 = vmatpush1.msra.mxu0 %v540
      %773 = vmatprep.subr.mxu0 0.0
      %774 = vmatpush1.msra.mxu0 %v541
      %775 = vmatprep.subr.mxu0 0.0
      %776 = vmatpush1.msra.mxu0 %v542
      %777 = vmatprep.subr.mxu0 0.0
      %778 = vmatpush1.msra.mxu0 %v543
      %779 = vmatprep.subr.mxu0 0.0
      %780 = vmatpush1.msra.mxu0 %v544
      %781 = vmatprep.subr.mxu0 0.0
      %782 = vmatpush1.msra.mxu0 %v545
      %783 = vmatprep.subr.mxu0 0.0
      %784 = vmatpush1.msra.mxu0 %v546
      %785 = vmatprep.subr.mxu0 0.0
      %786 = vmatpush1.msra.mxu0 %v547
      %787 = vmatprep.subr.mxu0 0.0
      %788 = vmatpush1.msra.mxu0 %v548
      %789 = vmatprep.subr.mxu0 0.0
      %790 = vmatpush1.msra.mxu0 %v549
      %791 = vmatprep.subr.mxu0 0.0
      %792 = vmatpush1.msra.mxu0 %v550
      %793 = vmatprep.subr.mxu0 0.0
      %794 = vmatpush1.msra.mxu0 %v551
      %795 = vmatprep.subr.mxu0 0.0
      %796 = vmatpush1.msra.mxu0 %v552
      %797 = vmatprep.subr.mxu0 0.0
      %798 = vmatpush1.msra.mxu0 %v553
      %799 = vmatprep.subr.mxu0 0.0
      %800 = vmatpush1.msra.mxu0 %v554
      %801 = vmatprep.subr.mxu0 0.0
      %802 = vmatpush1.msra.mxu0 %v555
      %803 = vmatprep.subr.mxu0 0.0
      %804 = vmatpush1.msra.mxu0 %v556
      %805 = vmatprep.subr.mxu0 0.0
      %806 = vmatpush1.msra.mxu0 %v557
      %807 = vmatprep.subr.mxu0 0.0
      %808 = vmatpush1.msra.mxu0 %v558
      %809 = vmatprep.subr.mxu0 0.0
      %810 = vmatpush1.msra.mxu0 %v559
      %811 = vmatprep.subr.mxu0 0.0
      %812 = vmatpush1.msra.mxu0 %v560
      %813 = vmatprep.subr.mxu0 0.0
      %814 = vmatpush1.msra.mxu0 %v561
      %815 = vmatprep.subr.mxu0 0.0
      %816 = vmatpush1.msra.mxu0 %v562
      %817 = vmatprep.subr.mxu0 0.0
      %818 = vmatpush1.msra.mxu0 %v563
      %819 = vmatprep.subr.mxu0 0.0
      %820 = vmatpush1.msra.mxu0 %v564
      %821 = vmatprep.mubr.f32.mxu0 %v756
      %822 = vmatmul.mubr.f32.gmra.mrb[0].mxu0 %v749
      %v823 = vpop.f32.mrb[0].mxu0
      %v824 = vadd.f32 0.0, %v823
      %v825 = vpop.f32.mrb[0].mxu0
      %826 = vdwg.mxu0
      %v827 = vmul.f32 %v824, 0.001953125
      %v828 = vld [vmem:[%s4] sm:$0x1]
      %v829 = vadd.f32 %v827, 1e-05
      %v830 = vrsqrt.pop %v829
      %v831 = vmul.f32 %v828, %v830
      %v832 = vld [vmem:[%s5] sm:$0x1]
      %v833 = vmul.f32 %v651, %v831
      %v834 = vsub.f32 %v832, %v833
      %v836 = vsel %vm652, %v831, 0
      %838 = vmatprep.subr.mxu0 %v566
      %839 = vmatpush1.msra.mxu0 %v565
      %840 = vmatprep.subr.mxu0 0.0
      %841 = vmatpush1.msra.mxu0 0.0
      %842 = vmatprep.subr.mxu0 0.0
      %843 = vmatpush1.msra.mxu0 0.0
      %844 = vmatprep.subr.mxu0 0.0
      %845 = vmatpush1.msra.mxu0 0.0
      %846 = vmatprep.subr.mxu0 0.0
      %847 = vmatpush1.msra.mxu0 0.0
      %848 = vmatprep.subr.mxu0 0.0
      %849 = vmatpush1.msra.mxu0 0.0
      %850 = vmatprep.subr.mxu0 0.0
      %851 = vmatpush1.msra.mxu0 0.0
      %852 = vmatprep.subr.mxu0 0.0
      %853 = vmatpush1.msra.mxu0 0.0
      %854 = vmatprep.subr.mxu0 0.0
      %855 = vmatpush1.msra.mxu0 0.0
      %856 = vmatprep.subr.mxu0 0.0
      %857 = vmatpush1.msra.mxu0 0.0
      %858 = vmatprep.subr.mxu0 0.0
      %859 = vmatpush1.msra.mxu0 0.0
      %860 = vmatprep.subr.mxu0 0.0
      %861 = vmatpush1.msra.mxu0 0.0
      %862 = vmatprep.subr.mxu0 0.0
      %863 = vmatpush1.msra.mxu0 0.0
      %864 = vmatprep.subr.mxu0 0.0
      %865 = vmatpush1.msra.mxu0 0.0
      %866 = vmatprep.subr.mxu0 0.0
      %867 = vmatpush1.msra.mxu0 0.0
      %868 = vmatprep.subr.mxu0 0.0
      %869 = vmatpush1.msra.mxu0 0.0
      %870 = vmatprep.subr.mxu0 0.0
      %871 = vmatpush1.msra.mxu0 0.0
      %872 = vmatprep.subr.mxu0 0.0
      %873 = vmatpush1.msra.mxu0 0.0
      %874 = vmatprep.subr.mxu0 0.0
      %875 = vmatpush1.msra.mxu0 0.0
      %876 = vmatprep.subr.mxu0 0.0
      %877 = vmatpush1.msra.mxu0 0.0
      %878 = vmatprep.subr.mxu0 0.0
      %879 = vmatpush1.msra.mxu0 0.0
      %880 = vmatprep.subr.mxu0 0.0
      %881 = vmatpush1.msra.mxu0 0.0
      %882 = vmatprep.subr.mxu0 0.0
      %883 = vmatpush1.msra.mxu0 0.0
      %884 = vmatprep.subr.mxu0 0.0
      %885 = vmatpush1.msra.mxu0 0.0
      %886 = vmatprep.subr.mxu0 0.0
      %887 = vmatpush1.msra.mxu0 0.0
      %888 = vmatprep.subr.mxu0 0.0
      %889 = vmatpush1.msra.mxu0 0.0
      %890 = vmatprep.subr.mxu0 0.0
      %891 = vmatpush1.msra.mxu0 0.0
      %892 = vmatprep.subr.mxu0 0.0
      %893 = vmatpush1.msra.mxu0 0.0
      %894 = vmatprep.subr.mxu0 0.0
      %895 = vmatpush1.msra.mxu0 0.0
      %896 = vmatprep.subr.mxu0 0.0
      %897 = vmatpush1.msra.mxu0 0.0
      %898 = vmatprep.subr.mxu0 0.0
      %899 = vmatpush1.msra.mxu0 0.0
      %900 = vmatprep.subr.mxu0 0.0
      %901 = vmatpush1.msra.mxu0 0.0
      %902 = vmatprep.mubr.f32.mxu0 0.0
      %903 = vmatmul.mubr.f32.gmra.mrb[0].mxu0 %v836
      %v904 = vpop.f32.mrb[0].mxu0
      %v905 = vadd.f32 0.0, %v904
      %v906 = vpop.f32.mrb[0].mxu0
      %v907 = vadd.f32 0.0, %v906
      %908 = vdwg.mxu0
      %v909 = vlaneseq
      %v910 = vshrl.u32 %v909, 7
      %v911 = vsub.s32 0, %v910
      %v912 = vrot.slane %v905, %v911
      %v913 = vlaneseq
      %v914 = vshrl.u32 %v913, 7
      %v915 = vsub.s32 0, %v914
      %v916 = vrot.slane %v907, %v915
      %v917 = vmul.f32 %v529, %v912
      %v918 = vmul.f32 %v530, %v916
      %v919 = vmul.f32 %v531, %v912
      %v920 = vmul.f32 %v532, %v916
      %v922 = vsel %vm652, %v834, 0
      %924 = vmatprep.subr.mxu0 %v566
      %925 = vmatpush1.msra.mxu0 %v565
      %926 = vmatprep.subr.mxu0 0.0
      %927 = vmatpush1.msra.mxu0 0.0
      %928 = vmatprep.subr.mxu0 0.0
      %929 = vmatpush1.msra.mxu0 0.0
      %930 = vmatprep.subr.mxu0 0.0
      %931 = vmatpush1.msra.mxu0 0.0
      %932 = vmatprep.subr.mxu0 0.0
      %933 = vmatpush1.msra.mxu0 0.0
      %934 = vmatprep.subr.mxu0 0.0
      %935 = vmatpush1.msra.mxu0 0.0
      %936 = vmatprep.subr.mxu0 0.0
      %937 = vmatpush1.msra.mxu0 0.0
      %938 = vmatprep.subr.mxu0 0.0
      %939 = vmatpush1.msra.mxu0 0.0
      %940 = vmatprep.subr.mxu0 0.0
      %941 = vmatpush1.msra.mxu0 0.0
      %942 = vmatprep.subr.mxu0 0.0
      %943 = vmatpush1.msra.mxu0 0.0
      %944 = vmatprep.subr.mxu0 0.0
      %945 = vmatpush1.msra.mxu0 0.0
      %946 = vmatprep.subr.mxu0 0.0
      %947 = vmatpush1.msra.mxu0 0.0
      %948 = vmatprep.subr.mxu0 0.0
      %949 = vmatpush1.msra.mxu0 0.0
      %950 = vmatprep.subr.mxu0 0.0
      %951 = vmatpush1.msra.mxu0 0.0
      %952 = vmatprep.subr.mxu0 0.0
      %953 = vmatpush1.msra.mxu0 0.0
      %954 = vmatprep.subr.mxu0 0.0
      %955 = vmatpush1.msra.mxu0 0.0
      %956 = vmatprep.subr.mxu0 0.0
      %957 = vmatpush1.msra.mxu0 0.0
      %958 = vmatprep.subr.mxu0 0.0
      %959 = vmatpush1.msra.mxu0 0.0
      %960 = vmatprep.subr.mxu0 0.0
      %961 = vmatpush1.msra.mxu0 0.0
      %962 = vmatprep.subr.mxu0 0.0
      %963 = vmatpush1.msra.mxu0 0.0
      %964 = vmatprep.subr.mxu0 0.0
      %965 = vmatpush1.msra.mxu0 0.0
      %966 = vmatprep.subr.mxu0 0.0
      %967 = vmatpush1.msra.mxu0 0.0
      %968 = vmatprep.subr.mxu0 0.0
      %969 = vmatpush1.msra.mxu0 0.0
      %970 = vmatprep.subr.mxu0 0.0
      %971 = vmatpush1.msra.mxu0 0.0
      %972 = vmatprep.subr.mxu0 0.0
      %973 = vmatpush1.msra.mxu0 0.0
      %974 = vmatprep.subr.mxu0 0.0
      %975 = vmatpush1.msra.mxu0 0.0
      %976 = vmatprep.subr.mxu0 0.0
      %977 = vmatpush1.msra.mxu0 0.0
      %978 = vmatprep.subr.mxu0 0.0
      %979 = vmatpush1.msra.mxu0 0.0
      %980 = vmatprep.subr.mxu0 0.0
      %981 = vmatpush1.msra.mxu0 0.0
      %982 = vmatprep.subr.mxu0 0.0
      %983 = vmatpush1.msra.mxu0 0.0
      %984 = vmatprep.subr.mxu0 0.0
      %985 = vmatpush1.msra.mxu0 0.0
      %986 = vmatprep.subr.mxu0 0.0
      %987 = vmatpush1.msra.mxu0 0.0
      %988 = vmatprep.mubr.f32.mxu0 0.0
      %989 = vmatmul.mubr.f32.gmra.mrb[0].mxu0 %v922
      %v990 = vpop.f32.mrb[0].mxu0
      %v991 = vadd.f32 0.0, %v990
      %v992 = vpop.f32.mrb[0].mxu0
      %v993 = vadd.f32 0.0, %v992
      %994 = vdwg.mxu0
      %v995 = vlaneseq
      %v996 = vshrl.u32 %v995, 7
      %v997 = vsub.s32 0, %v996
      %v998 = vrot.slane %v991, %v997
      %v999 = vlaneseq
      %v1000 = vshrl.u32 %v999, 7
      %v1001 = vsub.s32 0, %v1000
      %v1002 = vrot.slane %v993, %v1001
      %v1003 = vadd.f32 %v917, %v998
      %v1004 = vadd.f32 %v918, %v1002
      %v1005 = vadd.f32 %v919, %v998
      %v1006 = vadd.f32 %v920, %v1002
      %v1007 = vmax.f32 %v1003, %v1004
      %v1008 = vmax.f32 %v1005, %v1006
      %v1009 = vld [vmem:[%s8] sm:$0xff]
      %v1010 = vld [vmem:[%s8 + $0x8] sm:$0xff]
      %v1011 = vld [vmem:[%s8 + $0x10] sm:$0xff]
      %v1012 = vld [vmem:[%s8 + $0x18] sm:$0xff]
      %v1013 = vld [vmem:[%s8 + $0x20] sm:$0xff]
      %v1014 = vld [vmem:[%s8 + $0x28] sm:$0xff]
      %v1015 = vld [vmem:[%s8 + $0x30] sm:$0xff]
      %v1016 = vld [vmem:[%s8 + $0x38] sm:$0xff]
      %v1017 = vld [vmem:[%s8 + $0x40] sm:$0xff]
      %v1018 = vld [vmem:[%s8 + $0x48] sm:$0xff]
      %v1019 = vld [vmem:[%s8 + $0x50] sm:$0xff]
      %v1020 = vld [vmem:[%s8 + $0x58] sm:$0xff]
      %v1021 = vld [vmem:[%s8 + $0x60] sm:$0xff]
      %v1022 = vld [vmem:[%s8 + $0x68] sm:$0xff]
      %v1023 = vld [vmem:[%s8 + $0x70] sm:$0xff]
      %v1024 = vld [vmem:[%s8 + $0x78] sm:$0xff]
      %1025 = vmatprep.subr.mxu0 0.0
      %1026 = vmatpush1.msra.mxu0 %v1009
      %1027 = vmatprep.subr.mxu0 0.0
      %1028 = vmatpush1.msra.mxu0 %v1010
      %1029 = vmatprep.subr.mxu0 0.0
      %1030 = vmatpush1.msra.mxu0 %v1011
      %1031 = vmatprep.subr.mxu0 0.0
      %1032 = vmatpush1.msra.mxu0 %v1012
      %1033 = vmatprep.subr.mxu0 0.0
      %1034 = vmatpush1.msra.mxu0 %v1013
      %1035 = vmatprep.subr.mxu0 0.0
      %1036 = vmatpush1.msra.mxu0 %v1014
      %1037 = vmatprep.subr.mxu0 0.0
      %1038 = vmatpush1.msra.mxu0 %v1015
      %1039 = vmatprep.subr.mxu0 0.0
      %1040 = vmatpush1.msra.mxu0 %v1016
      %1041 = vmatprep.subr.mxu0 0.0
      %1042 = vmatpush1.msra.mxu0 %v1017
      %1043 = vmatprep.subr.mxu0 0.0
      %1044 = vmatpush1.msra.mxu0 %v1018
      %1045 = vmatprep.subr.mxu0 0.0
      %1046 = vmatpush1.msra.mxu0 %v1019
      %1047 = vmatprep.subr.mxu0 0.0
      %1048 = vmatpush1.msra.mxu0 %v1020
      %1049 = vmatprep.subr.mxu0 0.0
      %1050 = vmatpush1.msra.mxu0 %v1021
      %1051 = vmatprep.subr.mxu0 0.0
      %1052 = vmatpush1.msra.mxu0 %v1022
      %1053 = vmatprep.subr.mxu0 0.0
      %1054 = vmatpush1.msra.mxu0 %v1023
      %1055 = vmatprep.subr.mxu0 0.0
      %1056 = vmatpush1.msra.mxu0 %v1024
      %1057 = vmatprep.subr.mxu0 0.0
      %1058 = vmatpush1.msra.mxu0 0.0
      %1059 = vmatprep.subr.mxu0 0.0
      %1060 = vmatpush1.msra.mxu0 0.0
      %1061 = vmatprep.subr.mxu0 0.0
      %1062 = vmatpush1.msra.mxu0 0.0
      %1063 = vmatprep.subr.mxu0 0.0
      %1064 = vmatpush1.msra.mxu0 0.0
      %1065 = vmatprep.subr.mxu0 0.0
      %1066 = vmatpush1.msra.mxu0 0.0
      %1067 = vmatprep.subr.mxu0 0.0
      %1068 = vmatpush1.msra.mxu0 0.0
      %1069 = vmatprep.subr.mxu0 0.0
      %1070 = vmatpush1.msra.mxu0 0.0
      %1071 = vmatprep.subr.mxu0 0.0
      %1072 = vmatpush1.msra.mxu0 0.0
      %1073 = vmatprep.subr.mxu0 0.0
      %1074 = vmatpush1.msra.mxu0 0.0
      %1075 = vmatprep.subr.mxu0 0.0
      %1076 = vmatpush1.msra.mxu0 0.0
      %1077 = vmatprep.subr.mxu0 0.0
      %1078 = vmatpush1.msra.mxu0 0.0
      %1079 = vmatprep.subr.mxu0 0.0
      %1080 = vmatpush1.msra.mxu0 0.0
      %1081 = vmatprep.subr.mxu0 0.0
      %1082 = vmatpush1.msra.mxu0 0.0
      %1083 = vmatprep.subr.mxu0 0.0
      %1084 = vmatpush1.msra.mxu0 0.0
      %1085 = vmatprep.subr.mxu0 0.0
      %1086 = vmatpush1.msra.mxu0 0.0
      %1087 = vmatprep.subr.mxu0 0.0
      %1088 = vmatpush1.msra.mxu0 0.0
      %1089 = vmatprep.mubr.f32.mxu0 0.0
      %1090 = vmatmul.mubr.f32.gmra.mrb[0].mxu0 %v1007
      %v1091 = vpop.f32.mrb[0].mxu0
      %v1092 = vadd.f32 0.0, %v1091
      %v1093 = vpop.f32.mrb[0].mxu0
      %1094 = vmatprep.mubr.f32.mxu0 0.0
      %1095 = vmatmul.mubr.f32.gmra.mrb[0].mxu0 %v1008
      %v1096 = vpop.f32.mrb[0].mxu0
      %v1097 = vadd.f32 0.0, %v1096
      %v1098 = vpop.f32.mrb[0].mxu0
      %1099 = vdwg.mxu0
      %v1100 = vld [vmem:[%s9] sm:$0xff]
      %v1101 = vld [vmem:[%s9 + $0x8] sm:$0xff]
      %v1102 = vld [vmem:[%s9 + $0x10] sm:$0xff]
      %v1103 = vld [vmem:[%s9 + $0x18] sm:$0xff]
      %v1104 = vld [vmem:[%s9 + $0x20] sm:$0xff]
      %v1105 = vld [vmem:[%s9 + $0x28] sm:$0xff]
      %v1106 = vld [vmem:[%s9 + $0x30] sm:$0xff]
      %v1107 = vld [vmem:[%s9 + $0x38] sm:$0xff]
      %v1108 = vld [vmem:[%s9 + $0x40] sm:$0xff]
      %v1109 = vld [vmem:[%s9 + $0x48] sm:$0xff]
      %v1110 = vld [vmem:[%s9 + $0x50] sm:$0xff]
      %v1111 = vld [vmem:[%s9 + $0x58] sm:$0xff]
      %v1112 = vld [vmem:[%s9 + $0x60] sm:$0xff]
      %v1113 = vld [vmem:[%s9 + $0x68] sm:$0xff]
      %v1114 = vld [vmem:[%s9 + $0x70] sm:$0xff]
      %v1115 = vld [vmem:[%s9 + $0x78] sm:$0xff]
      %1116 = vmatprep.subr.mxu0 0.0
      %1117 = vmatpush1.msra.mxu0 %v1100
      %1118 = vmatprep.subr.mxu0 0.0
      %1119 = vmatpush1.msra.mxu0 %v1101
      %1120 = vmatprep.subr.mxu0 0.0
      %1121 = vmatpush1.msra.mxu0 %v1102
      %1122 = vmatprep.subr.mxu0 0.0
      %1123 = vmatpush1.msra.mxu0 %v1103
      %1124 = vmatprep.subr.mxu0 0.0
      %1125 = vmatpush1.msra.mxu0 %v1104
      %1126 = vmatprep.subr.mxu0 0.0
      %1127 = vmatpush1.msra.mxu0 %v1105
      %1128 = vmatprep.subr.mxu0 0.0
      %1129 = vmatpush1.msra.mxu0 %v1106
      %1130 = vmatprep.subr.mxu0 0.0
      %1131 = vmatpush1.msra.mxu0 %v1107
      %1132 = vmatprep.subr.mxu0 0.0
      %1133 = vmatpush1.msra.mxu0 %v1108
      %1134 = vmatprep.subr.mxu0 0.0
      %1135 = vmatpush1.msra.mxu0 %v1109
      %1136 = vmatprep.subr.mxu0 0.0
      %1137 = vmatpush1.msra.mxu0 %v1110
      %1138 = vmatprep.subr.mxu0 0.0
      %1139 = vmatpush1.msra.mxu0 %v1111
      %1140 = vmatprep.subr.mxu0 0.0
      %1141 = vmatpush1.msra.mxu0 %v1112
      %1142 = vmatprep.subr.mxu0 0.0
      %1143 = vmatpush1.msra.mxu0 %v1113
      %1144 = vmatprep.subr.mxu0 0.0
      %1145 = vmatpush1.msra.mxu0 %v1114
      %1146 = vmatprep.subr.mxu0 0.0
      %1147 = vmatpush1.msra.mxu0 %v1115
      %1148 = vmatprep.subr.mxu0 0.0
      %1149 = vmatpush1.msra.mxu0 0.0
      %1150 = vmatprep.subr.mxu0 0.0
      %1151 = vmatpush1.msra.mxu0 0.0
      %1152 = vmatprep.subr.mxu0 0.0
      %1153 = vmatpush1.msra.mxu0 0.0
      %1154 = vmatprep.subr.mxu0 0.0
      %1155 = vmatpush1.msra.mxu0 0.0
      %1156 = vmatprep.subr.mxu0 0.0
      %1157 = vmatpush1.msra.mxu0 0.0
      %1158 = vmatprep.subr.mxu0 0.0
      %1159 = vmatpush1.msra.mxu0 0.0
      %1160 = vmatprep.subr.mxu0 0.0
      %1161 = vmatpush1.msra.mxu0 0.0
      %1162 = vmatprep.subr.mxu0 0.0
      %1163 = vmatpush1.msra.mxu0 0.0
      %1164 = vmatprep.subr.mxu0 0.0
      %1165 = vmatpush1.msra.mxu0 0.0
      %1166 = vmatprep.subr.mxu0 0.0
      %1167 = vmatpush1.msra.mxu0 0.0
      %1168 = vmatprep.subr.mxu0 0.0
      %1169 = vmatpush1.msra.mxu0 0.0
      %1170 = vmatprep.subr.mxu0 0.0
      %1171 = vmatpush1.msra.mxu0 0.0
      %1172 = vmatprep.subr.mxu0 0.0
      %1173 = vmatpush1.msra.mxu0 0.0
      %1174 = vmatprep.subr.mxu0 0.0
      %1175 = vmatpush1.msra.mxu0 0.0
      %1176 = vmatprep.subr.mxu0 0.0
      %1177 = vmatpush1.msra.mxu0 0.0
      %1178 = vmatprep.subr.mxu0 0.0
      %1179 = vmatpush1.msra.mxu0 0.0
      %1180 = vmatprep.mubr.f32.mxu0 0.0
      %1181 = vmatmul.mubr.f32.gmra.mrb[0].mxu0 %v1007
      %v1182 = vpop.f32.mrb[0].mxu0
      %v1183 = vadd.f32 0.0, %v1182
      %v1184 = vpop.f32.mrb[0].mxu0
      %1185 = vmatprep.mubr.f32.mxu0 0.0
      %1186 = vmatmul.mubr.f32.gmra.mrb[0].mxu0 %v1008
      %v1187 = vpop.f32.mrb[0].mxu0
      %v1188 = vadd.f32 0.0, %v1187
      %v1189 = vpop.f32.mrb[0].mxu0
      %1190 = vdwg.mxu0
      %v1191 = vmax.f32 %v1092, %v1183
      %v1192 = vmax.f32 %v1097, %v1188
      %vm1193 = vcmask 523264
      %1194 = vst.msk [vmem:[#allocation3] sm:$0xff] %vm1193, %v1191
      %1195 = vst.msk [vmem:[#allocation3 + $0x8] sm:$0xff] %vm1193, %v1192
    $region45: #{tpu_custom_call.1} parent=1 // pred_fallthru
      _
    // Predicated region
    $region46: #{tpu_custom_call.1} parent=1 // pred_check
      _
    $region47: #{tpu_custom_call.1} parent=1 // pred_check_branch
      %1197 = sbr.rel (0) target = $region49
    $region48: #{tpu_custom_call.1} parent=1 // pred_region
      %s1199 = ssub.s32 256, 256
      %1200 = vsyncadd [#allocation4], %s1199
      %s1201 = sshll.u32 [#allocation3], 4
      %s1202 = int_to_ptr.vmem [resolvable:$true] %s1201
      %1207 = dma.vmem_to_hbm [thread:$0]  %s1202, 256, %s10, [#allocation4], 128, 128, 8
    $region49: #{tpu_custom_call.1} parent=1 // pred_fallthru
      _
    // Predicated region
    $region50: #{tpu_custom_call.1} parent=1 // pred_check
      _
    $region51: #{tpu_custom_call.1} parent=1 // pred_check_branch
      %1209 = sbr.rel (0) target = $region53
    $region52: #{tpu_custom_call.1} parent=1 // pred_region
      %1210 = dma.done [#allocation4], 256
    $region53: #{tpu_custom_call.1} parent=1 // pred_fallthru
      _
    %1211 = vsyncpa [#allocation4], 1

</llo_original>
